<compile_context>
chip_gen: v7x
topology: tpu7x:2x2x1
jax: 0.10.0
libtpu: 0.0.40
codegen_flags: <defaults>
</compile_context>

<pallas_src>
import numpy as np
from collections import defaultdict

import jax
import jax.numpy as jnp
from jax.experimental import pallas as pl
from jax.experimental.pallas import tpu as pltpu

# ----------------------------- configuration --------------------------------
STAGES = ["skel_trans", "attr_trans", "reconfig", "execution"]
NUM_STAGES = len(STAGES)

STATE_DIM = 32          # agent.state_dim
D_MODEL = 64            # transformer_specs: model dim (= transformer.out_dim)
D_FF = 128              # transformer_specs: feed-forward dim
MLP_HIDDEN = (64, 64)   # cfg['mlp'], htype='tanh'
H1, H2 = MLP_HIDDEN

# bf16 operands are the MXU-native path on v5e / v6e / v7x; accumulation stays f32 via
# preferred_element_type and every elementwise/softmax/tanh op stays f32.
MATMUL_DTYPE = jnp.bfloat16


# ----------------------------- Pallas kernel ---------------------------------
def _fused_stage_kernel(nep_ref,                               # SMEM scalar prefetch (S,)
                        x_ref, cnt_ref,                        # per-stage batch inputs
                        win_ref, winqk_ref, wvo_ref, w1_ref, w2_ref,
                        wm1_ref, wm2_ref, bias_ref,            # stacked weights
                        out_ref):
    """One stage per grid step; whole padded episode batch of that stage per step."""
    n_ep = nep_ref[pl.program_id(0)]        # number of real episodes in this stage

    @pl.when(n_ep == 0)
    def _skip():
        # cold stage: just emit zeros (up to 3/4 of all compute skipped in typical rollouts)
        out_ref[...] = jnp.zeros_like(out_ref)

    @pl.when(n_ep > 0)
    def _compute():
        x = x_ref[0]                        # (B, L, STATE_DIM) f32
        cnt = cnt_ref[0]                    # (B, 1) int32 node counts per episode slot
        B, L, Din = x.shape

        bias = bias_ref[0]                  # (8, 128) packed f32 bias slab
        b_in = bias[0:1, :D_MODEL]
        b_qk = bias[1:2, :D_MODEL]
        b_o = bias[2:3, :D_MODEL]
        b_1 = bias[3:4, :D_FF]
        b_2 = bias[4:5, :D_MODEL]
        b_m1 = bias[5:6, :H1]
        b_m2 = bias[6:7, :H2]
        wh_row = bias[7:8, :H2]             # value-head weight as a lane row (VPU path)
        b_h = bias[7:8, H2:H2 + 1]          # value-head bias scalar

        def mm(a, w_ref):                   # bf16 operands, f32 accumulation
            return jnp.dot(a.astype(MATMUL_DTYPE), w_ref[0],
                           preferred_element_type=jnp.float32)

        # input projection -> model dim for every node (needed as attention keys/values)
        h2 = mm(x.reshape(B * L, Din), win_ref) + b_in          # (B*L, Dm) f32
        h3 = h2.reshape(B, L, D_MODEL)

        # root query, with Win @ (Wq Wk^T / sqrt(Dm)) folded on the host:
        #   s_root = x_root @ win_qk + b_in @ (Wq Wk^T / sqrt(Dm))
        s_root = mm(x[:, 0, :], winqk_ref) + b_qk               # (B, Dm) f32

        # masked single-head attention for the root row ONLY (VPU/XLU; no MXU M=1 matmul,
        # no (B, L, L) temporary). Additive key mask built in-kernel from counts.
        key_pos = jax.lax.broadcasted_iota(jnp.int32, (B, L), 1)
        madd = jnp.where(key_pos < cnt, 0.0, -1e9)              # (B, L)
        scores = jnp.sum(s_root[:, None, :] * h3, axis=-1) + madd   # (B, L)

        smax = jnp.max(scores, axis=-1, keepdims=True)
        p = jnp.exp(scores - smax)
        p = p * pl.reciprocal(jnp.sum(p, axis=-1, keepdims=True), approx=True)
        ctx = jnp.sum(p[:, :, None] * h3, axis=1)               # (B, Dm)

        # residual attention output for the root row, Wvo = Wv @ Wo folded on host
        r = h3[:, 0, :] + mm(ctx, wvo_ref) + b_o                # (B, Dm)

        # feed-forward block (ReLU) + residual
        f = jnp.maximum(mm(r, w1_ref) + b_1, 0.0)
        r = r + mm(f, w2_ref) + b_2

        # MLP (htype = tanh)
        m = jnp.tanh(mm(r, wm1_ref) + b_m1)
        m = jnp.tanh(mm(m, wm2_ref) + b_m2)

        # value head: VPU multiply + lane reduce instead of an N=1 MXU matmul
        v = jnp.sum(m * wh_row, axis=-1, keepdims=True) + b_h   # (B, 1)

        # padded episode slots emit exact zeros (clean (S, B, 1) value table)
        out_ref[0] = jnp.where(cnt > 0, v, 0.0)


def _stages_forward_impl(stage_nep, obs4, counts3,
                         win, winqk, wvo, w1, w2, wm1, wm2, bias):
    """stage_nep: (S,) int32 episode count per stage; obs4: (S, B, L, STATE_DIM) f32;
    counts3: (S, B, 1) int32 -> root values (S, B, 1) f32."""
    S, B, L, Din = obs4.shape
    weights = (win, winqk, wvo, w1, w2, wm1, wm2, bias)
    w_specs = [pl.BlockSpec((1,) + tuple(w.shape[1:]), lambda s, nep: (s, 0, 0))
               for w in weights]

    return pl.pallas_call(
        _fused_stage_kernel,
        out_shape=jax.ShapeDtypeStruct((S, B, 1), jnp.float32),
        grid_spec=pltpu.PrefetchScalarGridSpec(
            num_scalar_prefetch=1,                  # stage_nep -> SMEM
            grid=(S,),
            in_specs=[pl.BlockSpec((1, B, L, Din), lambda s, nep: (s, 0, 0, 0)),
                      pl.BlockSpec((1, B, 1), lambda s, nep: (s, 0, 0))] + w_specs,
            out_specs=pl.BlockSpec((1, B, 1), lambda s, nep: (s, 0, 0)),
        ),
        compiler_params=pltpu.CompilerParams(dimension_semantics=("parallel",)),
    )(stage_nep, obs4, counts3, *weights)


_stages_forward = jax.jit(_stages_forward_impl)


# ----------------------------- parameter handling -----------------------------
def init_stage_params(key):
    shapes = {
        "win": (STATE_DIM, D_MODEL), "bin": (1, D_MODEL),
        "wq": (D_MODEL, D_MODEL), "wk": (D_MODEL, D_MODEL),
        "wv": (D_MODEL, D_MODEL), "wo": (D_MODEL, D_MODEL), "bo": (1, D_MODEL),
        "w1": (D_MODEL, D_FF), "b1": (1, D_FF),
        "w2": (D_FF, D_MODEL), "b2": (1, D_MODEL),
        "wm1": (D_MODEL, H1), "bm1": (1, H1),
        "wm2": (H1, H2), "bm2": (1, H2),
        "wh": (H2, 1), "bh": (1, 1),
    }
    params = {}
    keys = jax.random.split(key, len(shapes))
    for (name, shp), k in zip(shapes.items(), keys):
        fan_in = shp[0]
        scale = 0.01 if name in ("wh", "bh") else 1.0 / np.sqrt(fan_in)  # init_fc_weights
        params[name] = (scale * jax.random.normal(k, shp)).astype(jnp.float32)
    return params


def prepare_packed_params(all_params):
    """Fold attention weights in f32 on the host, pack biases + value-head row into one
    (8, 128) slab, stack per stage, cast weight matrices to the MXU operand dtype."""
    def one(p):
        g = lambda n: np.asarray(p[n], np.float32)
        wqk = (g("wq") @ g("wk").T) / np.float32(np.sqrt(D_MODEL))   # scores = h Wqk h^T
        win_qk = (g("win") @ wqk).astype(np.float32)                 # root query from x
        b_qk = (g("bin") @ wqk).astype(np.float32)
        wvo = (g("wv") @ g("wo")).astype(np.float32)                 # attn-out = (p h) Wvo

        bias = np.zeros((8, 128), np.float32)
        bias[0, :D_MODEL] = g("bin")[0]
        bias[1, :D_MODEL] = b_qk[0]
        bias[2, :D_MODEL] = g("bo")[0]
        bias[3, :D_FF] = g("b1")[0]
        bias[4, :D_MODEL] = g("b2")[0]
        bias[5, :H1] = g("bm1")[0]
        bias[6, :H2] = g("bm2")[0]
        bias[7, :H2] = g("wh")[:, 0]        # value-head weight row (VPU reduce in-kernel)
        bias[7, H2] = g("bh")[0, 0]         # value-head bias
        return (g("win"), win_qk, wvo, g("w1"), g("w2"), g("wm1"), g("wm2"), bias)

    per_stage = [one(all_params[s]) for s in STAGES]
    packed = []
    for i in range(8):
        arr = jnp.stack([jnp.asarray(ps[i]) for ps in per_stage], axis=0)
        if i < 7:                            # weight matrices -> bf16 MXU operands
            arr = arr.astype(MATMUL_DTYPE)
        packed.append(arr)                   # bias slab stays f32
    return tuple(packed)


# ----------------------------- forward driver --------------------------------
def bodygen_reconfig_value_forward(episodes, packed_params):
    """episodes: list of dicts {obs: (n_i, STATE_DIM), stage: int, num_nodes: int}.
    Returns (num_episodes, 1) root-node values, matching the PyTorch forward output."""
    n_ep = len(episodes)
    stage_idx = [int(e["stage"]) for e in episodes]
    num_nodes = [int(e["num_nodes"]) for e in episodes]

    # bucketed shapes (multiples of 8) -> the jitted pallas executable is reused across calls
    L_pad = max(8, -(-max(num_nodes) // 8) * 8)
    per_stage_counts = [stage_idx.count(s) for s in range(NUM_STAGES)]
    b_needed = max(1, max(per_stage_counts))
    B_max = -(-b_needed // 8) * 8

    obs4 = np.zeros((NUM_STAGES, B_max, L_pad, STATE_DIM), np.float32)
    counts3 = np.zeros((NUM_STAGES, B_max, 1), np.int32)
    stage_nep = np.zeros((NUM_STAGES,), np.int32)
    flat_idx = np.zeros((n_ep,), np.int32)
    slot_used = [0] * NUM_STAGES
    for i, e in enumerate(episodes):
        s, n = stage_idx[i], num_nodes[i]
        slot = slot_used[s]
        slot_used[s] += 1
        obs4[s, slot, :n] = np.asarray(e["obs"], np.float32)
        counts3[s, slot, 0] = n
        flat_idx[i] = s * B_max + slot
    stage_nep[:] = slot_used

    out = _stages_forward(jnp.asarray(stage_nep), jnp.asarray(obs4),
                          jnp.asarray(counts3), *packed_params)
    value = out.reshape(NUM_STAGES * B_max, 1)[jnp.asarray(flat_idx)]   # single gather
    return value


# ----------------------------- pure-JAX reference ------------------------------
def _stage_ref(params, padded_obs, mask_bool):
    def one(x, m):
        h = x @ params["win"] + params["bin"]
        q, k, v = h @ params["wq"], h @ params["wk"], h @ params["wv"]
        s = (q @ k.T) / np.sqrt(D_MODEL)
        s = jnp.where(m, s, -1e9)
        p = jax.nn.softmax(s, axis=-1)
        h = h + (p @ v) @ params["wo"] + params["bo"]
        f = jax.nn.relu(h @ params["w1"] + params["b1"])
        h = h + f @ params["w2"] + params["b2"]
        h = jnp.tanh(h @ params["wm1"] + params["bm1"])
        h = jnp.tanh(h @ params["wm2"] + params["bm2"])
        return h @ params["wh"] + params["bh"]
    return jax.vmap(one)(padded_obs, mask_bool)


def bodygen_reconfig_value_reference(episodes, all_params):
    """Mirrors the original PyTorch forward: per-node values, scatter, root gather."""
    num_nodes = [int(e["num_nodes"]) for e in episodes]
    num_nodes_cum = np.cumsum(num_nodes) if len(episodes) > 1 else None
    total = int(sum(num_nodes))

    stage_eps = defaultdict(list)
    node_design_mask = {s: [] for s in STAGES}
    for e, n in zip(episodes, num_nodes):
        cur = STAGES[int(e["stage"])]
        stage_eps[cur].append(e)
        for s in STAGES:
            node_design_mask[s] += [cur == s] * n

    value_nodes = jnp.zeros((total, 1), jnp.float32)
    for stage in STAGES:
        eps = stage_eps[stage]
        if not eps:
            continue
        ns = [int(e["num_nodes"]) for e in eps]
        L = max(ns)
        B = len(eps)
        padded = np.zeros((B, L, STATE_DIM), np.float32)
        maskb = np.zeros((B, 1, L), bool)
        for i, e in enumerate(eps):
            padded[i, :ns[i]] = np.asarray(e["obs"], np.float32)
            maskb[i, 0, :ns[i]] = True
        vals = _stage_ref(all_params[stage], jnp.asarray(padded), jnp.asarray(maskb))
        flat = jnp.concatenate([vals[i, :ns[i]] for i in range(B)], axis=0)
        idx = np.nonzero(np.asarray(node_design_mask[stage]))[0]
        value_nodes = value_nodes.at[jnp.asarray(idx)].set(flat)

    if num_nodes_cum is None:
        return value_nodes[jnp.asarray([0])]
    roots = np.concatenate([np.zeros(1), num_nodes_cum[:-1]]).astype(np.int64)
    return value_nodes[jnp.asarray(roots)]


# ----------------------------------- main ------------------------------------
if __name__ == "__main__":
    root = jax.random.PRNGKey(0)
    pkeys = jax.random.split(root, NUM_STAGES)
    all_params = {s: init_stage_params(k) for s, k in zip(STAGES, pkeys)}
    packed_params = prepare_packed_params(all_params)

    # 7 episodes across 3 of the 4 stages (stage 1 intentionally EMPTY to exercise the
    # pl.when empty-stage skip), with variable node counts (padded rows / padded slots).
    ep_specs = [(5, 0), (7, 2), (4, 3), (6, 0), (3, 2), (8, 3), (2, 0)]
    episodes = []
    okey = jax.random.PRNGKey(0)
    for n, st in ep_specs:
        okey, sub = jax.random.split(okey)
        episodes.append({
            "obs": jax.random.normal(sub, (n, STATE_DIM), jnp.float32),
            "stage": st,
            "num_nodes": n,
        })

    value = bodygen_reconfig_value_forward(episodes, packed_params)
    value = jax.block_until_ready(value)

    value_ref = bodygen_reconfig_value_reference(episodes, all_params)
    value_ref = jax.block_until_ready(value_ref)

    assert value.shape == (len(episodes), 1), value.shape
    # tolerance covers bf16 MXU operands + approx-EUP reciprocal in the softmax
    np.testing.assert_allclose(np.asarray(value), np.asarray(value_ref),
                               rtol=5e-2, atol=1e-2)
    print("KERNEL_OK")
</pallas_src>

<mosaic_0001>
module attributes {stable_mosaic.version = 11 : i64} {
  func.func @_fused_stage_kernel(%arg0: i32, %arg1: memref<4xi32, #tpu.memory_space<smem>>, %arg2: memref<1x8x8x32xf32, #tpu.memory_space<vmem>>, %arg3: memref<1x8x1xi32, #tpu.memory_space<vmem>>, %arg4: memref<1x32x64xbf16, #tpu.memory_space<vmem>>, %arg5: memref<1x32x64xbf16, #tpu.memory_space<vmem>>, %arg6: memref<1x64x64xbf16, #tpu.memory_space<vmem>>, %arg7: memref<1x64x128xbf16, #tpu.memory_space<vmem>>, %arg8: memref<1x128x64xbf16, #tpu.memory_space<vmem>>, %arg9: memref<1x64x64xbf16, #tpu.memory_space<vmem>>, %arg10: memref<1x64x64xbf16, #tpu.memory_space<vmem>>, %arg11: memref<1x8x128xf32, #tpu.memory_space<vmem>>, %arg12: memref<1x8x1xf32, #tpu.memory_space<vmem>>) attributes {dimension_semantics = [#tpu.dimension_semantics<parallel>], iteration_bounds = array<i64: 4>, scalar_prefetch = 1 : i64, scratch_operands = 0 : i64, tpu.core_type = #tpu.core_type<tc>, window_params = [{transform_indices = @transform_0, window_bounds = array<i64: 1, 8, 8, 32>}, {transform_indices = @transform_1, window_bounds = array<i64: 1, 8, 1>}, {transform_indices = @transform_2, window_bounds = array<i64: 1, 32, 64>}, {transform_indices = @transform_3, window_bounds = array<i64: 1, 32, 64>}, {transform_indices = @transform_4, window_bounds = array<i64: 1, 64, 64>}, {transform_indices = @transform_5, window_bounds = array<i64: 1, 64, 128>}, {transform_indices = @transform_6, window_bounds = array<i64: 1, 128, 64>}, {transform_indices = @transform_7, window_bounds = array<i64: 1, 64, 64>}, {transform_indices = @transform_8, window_bounds = array<i64: 1, 64, 64>}, {transform_indices = @transform_9, window_bounds = array<i64: 1, 8, 128>}, {transform_indices = @transform_10, window_bounds = array<i64: 1, 8, 1>}]} {
    %0 = arith.index_cast %arg0 : i32 to index
    %1 = memref.load %arg1[%0] : memref<4xi32, #tpu.memory_space<smem>>
    %c0_i32 = arith.constant 0 : i32
    %2 = arith.cmpi eq, %1, %c0_i32 : i32
    %3 = arith.extui %2 : i1 to i32
    %c0_i32_0 = arith.constant 0 : i32
    %4 = arith.cmpi ne, %3, %c0_i32_0 : i32
    scf.if %4 {
      %cst = arith.constant 0.000000e+00 : f32
      %8 = vector.broadcast %cst : f32 to vector<1x8x1xf32>
      %c0 = arith.constant 0 : index
      %c0_3 = arith.constant 0 : index
      %c0_4 = arith.constant 0 : index
      %9 = vector.load %arg12[%c0, %c0_3, %c0_4] : memref<1x8x1xf32, #tpu.memory_space<vmem>>, vector<1x8x1xf32>
      tpu.vector_store %arg12[%c0, %c0_3, %c0_4], %8 {strides = array<i32>} : memref<1x8x1xf32, #tpu.memory_space<vmem>>, vector<1x8x1xf32>,
    } else {
    }
    %c0_i32_1 = arith.constant 0 : i32
    %5 = arith.cmpi sgt, %1, %c0_i32_1 : i32
    %6 = arith.extui %5 : i1 to i32
    %c0_i32_2 = arith.constant 0 : i32
    %7 = arith.cmpi ne, %6, %c0_i32_2 : i32
    scf.if %7 {
      %c0 = arith.constant 0 : index
      %c0_3 = arith.constant 0 : index
      %c0_4 = arith.constant 0 : index
      %c0_5 = arith.constant 0 : index
      %8 = vector.load %arg2[%c0, %c0_3, %c0_4, %c0_5] : memref<1x8x8x32xf32, #tpu.memory_space<vmem>>, vector<1x8x8x32xf32>
      %9 = vector.shape_cast %8 : vector<1x8x8x32xf32> to vector<8x8x32xf32>
      %c0_6 = arith.constant 0 : index
      %c0_7 = arith.constant 0 : index
      %c0_8 = arith.constant 0 : index
      %10 = vector.load %arg3[%c0_6, %c0_7, %c0_8] : memref<1x8x1xi32, #tpu.memory_space<vmem>>, vector<1x8x1xi32>
      %11 = vector.shape_cast %10 : vector<1x8x1xi32> to vector<8x1xi32>
      %c0_9 = arith.constant 0 : index
      %c0_10 = arith.constant 0 : index
      %c0_11 = arith.constant 0 : index
      %12 = vector.load %arg11[%c0_9, %c0_10, %c0_11] : memref<1x8x128xf32, #tpu.memory_space<vmem>>, vector<1x8x128xf32>
      %13 = vector.shape_cast %12 : vector<1x8x128xf32> to vector<8x128xf32>
      %14 = vector.extract_strided_slice %13 {offsets = [0, 0], sizes = [1, 64], strides = [1, 1]} : vector<8x128xf32> to vector<1x64xf32>
      %15 = vector.extract_strided_slice %13 {offsets = [1, 0], sizes = [1, 64], strides = [1, 1]} : vector<8x128xf32> to vector<1x64xf32>
      %16 = vector.extract_strided_slice %13 {offsets = [2, 0], sizes = [1, 64], strides = [1, 1]} : vector<8x128xf32> to vector<1x64xf32>
      %17 = vector.extract_strided_slice %13 {offsets = [3, 0], sizes = [1, 128], strides = [1, 1]} : vector<8x128xf32> to vector<1x128xf32>
      %18 = vector.extract_strided_slice %13 {offsets = [4, 0], sizes = [1, 64], strides = [1, 1]} : vector<8x128xf32> to vector<1x64xf32>
      %19 = vector.extract_strided_slice %13 {offsets = [5, 0], sizes = [1, 64], strides = [1, 1]} : vector<8x128xf32> to vector<1x64xf32>
      %20 = vector.extract_strided_slice %13 {offsets = [6, 0], sizes = [1, 64], strides = [1, 1]} : vector<8x128xf32> to vector<1x64xf32>
      %21 = vector.extract_strided_slice %13 {offsets = [7, 0], sizes = [1, 64], strides = [1, 1]} : vector<8x128xf32> to vector<1x64xf32>
      %22 = vector.extract_strided_slice %13 {offsets = [7, 64], sizes = [1, 1], strides = [1, 1]} : vector<8x128xf32> to vector<1x1xf32>
      %23 = vector.shape_cast %9 : vector<8x8x32xf32> to vector<64x32xf32>
      %24 = arith.truncf %23 : vector<64x32xf32> to vector<64x32xbf16>
      %c0_12 = arith.constant 0 : index
      %c0_13 = arith.constant 0 : index
      %c0_14 = arith.constant 0 : index
      %25 = vector.load %arg4[%c0_12, %c0_13, %c0_14] : memref<1x32x64xbf16, #tpu.memory_space<vmem>>, vector<1x32x64xbf16>
      %26 = vector.shape_cast %25 : vector<1x32x64xbf16> to vector<32x64xbf16>
      %cst = arith.constant dense<0.000000e+00> : vector<64x64xf32>
      %27 = tpu.matmul %24, %26, %cst {dimension_numbers = #tpu.dot_dimension_numbers<[1], [0], [0], [1], [0, 0, 1, 1], [], []>} : vector<64x32xbf16>, vector<32x64xbf16>, vector<64x64xf32> -> vector<64x64xf32>
      %28 = vector.broadcast %14 : vector<1x64xf32> to vector<64x64xf32>
      %29 = arith.addf %27, %28 : vector<64x64xf32>
      %30 = vector.shape_cast %29 : vector<64x64xf32> to vector<8x8x64xf32>
      %31 = vector.extract_strided_slice %9 {offsets = [0, 0, 0], sizes = [8, 1, 32], strides = [1, 1, 1]} : vector<8x8x32xf32> to vector<8x1x32xf32>
      %32 = vector.shape_cast %31 : vector<8x1x32xf32> to vector<8x32xf32>
      %33 = arith.truncf %32 : vector<8x32xf32> to vector<8x32xbf16>
      %c0_15 = arith.constant 0 : index
      %c0_16 = arith.constant 0 : index
      %c0_17 = arith.constant 0 : index
      %34 = vector.load %arg5[%c0_15, %c0_16, %c0_17] : memref<1x32x64xbf16, #tpu.memory_space<vmem>>, vector<1x32x64xbf16>
      %35 = vector.shape_cast %34 : vector<1x32x64xbf16> to vector<32x64xbf16>
      %cst_18 = arith.constant dense<0.000000e+00> : vector<8x64xf32>
      %36 = tpu.matmul %33, %35, %cst_18 {dimension_numbers = #tpu.dot_dimension_numbers<[1], [0], [0], [1], [0, 0, 1, 1], [], []>} : vector<8x32xbf16>, vector<32x64xbf16>, vector<8x64xf32> -> vector<8x64xf32>
      %37 = vector.broadcast %15 : vector<1x64xf32> to vector<8x64xf32>
      %38 = arith.addf %36, %37 : vector<8x64xf32>
      %39 = tpu.iota {dimensions = array<i32: 1>} : vector<8x8xi32>
      %40 = vector.broadcast %11 : vector<8x1xi32> to vector<8x8xi32>
      %41 = arith.cmpi slt, %39, %40 : vector<8x8xi32>
      %cst_19 = arith.constant 0.000000e+00 : f32
      %cst_20 = arith.constant -1.000000e+09 : f32
      %42 = vector.broadcast %cst_19 : f32 to vector<8x8xf32>
      %43 = vector.broadcast %cst_20 : f32 to vector<8x8xf32>
      %44 = arith.select %41, %42, %43 : vector<8x8xi1>, vector<8x8xf32>
      %45 = vector.shape_cast %38 : vector<8x64xf32> to vector<8x1x64xf32>
      %46 = vector.broadcast %45 : vector<8x1x64xf32> to vector<8x8x64xf32>
      %47 = arith.mulf %46, %30 : vector<8x8x64xf32>
      %cst_21 = arith.constant dense<0.000000e+00> : vector<8x8xf32>
      %48 = vector.multi_reduction <add>, %47, %cst_21 [2] : vector<8x8x64xf32> to vector<8x8xf32>
      %49 = arith.addf %48, %44 : vector<8x8xf32>
      %cst_22 = arith.constant dense<0xFF800000> : vector<8xf32>
      %50 = vector.multi_reduction <maximumf>, %49, %cst_22 [1] : vector<8x8xf32> to vector<8xf32>
      %51 = vector.shape_cast %50 : vector<8xf32> to vector<8x1xf32>
      %52 = vector.broadcast %51 : vector<8x1xf32> to vector<8x8xf32>
      %53 = arith.subf %49, %52 : vector<8x8xf32>
      %54 = math.exp %53 : vector<8x8xf32>
      %cst_23 = arith.constant dense<0.000000e+00> : vector<8xf32>
      %55 = vector.multi_reduction <add>, %54, %cst_23 [1] : vector<8x8xf32> to vector<8xf32>
      %56 = vector.shape_cast %55 : vector<8xf32> to vector<8x1xf32>
      %57 = tpu.reciprocal %56 {approx = true} : vector<8x1xf32> -> vector<8x1xf32>
      %58 = vector.broadcast %57 : vector<8x1xf32> to vector<8x8xf32>
      %59 = arith.mulf %54, %58 : vector<8x8xf32>
      %60 = vector.shape_cast %59 : vector<8x8xf32> to vector<8x8x1xf32>
      %61 = vector.broadcast %60 : vector<8x8x1xf32> to vector<8x8x64xf32>
      %62 = arith.mulf %61, %30 : vector<8x8x64xf32>
      %cst_24 = arith.constant dense<0.000000e+00> : vector<8x64xf32>
      %63 = vector.multi_reduction <add>, %62, %cst_24 [1] : vector<8x8x64xf32> to vector<8x64xf32>
      %64 = vector.extract_strided_slice %30 {offsets = [0, 0, 0], sizes = [8, 1, 64], strides = [1, 1, 1]} : vector<8x8x64xf32> to vector<8x1x64xf32>
      %65 = vector.shape_cast %64 : vector<8x1x64xf32> to vector<8x64xf32>
      %66 = arith.truncf %63 : vector<8x64xf32> to vector<8x64xbf16>
      %c0_25 = arith.constant 0 : index
      %c0_26 = arith.constant 0 : index
      %c0_27 = arith.constant 0 : index
      %67 = vector.load %arg6[%c0_25, %c0_26, %c0_27] : memref<1x64x64xbf16, #tpu.memory_space<vmem>>, vector<1x64x64xbf16>
      %68 = vector.shape_cast %67 : vector<1x64x64xbf16> to vector<64x64xbf16>
      %cst_28 = arith.constant dense<0.000000e+00> : vector<8x64xf32>
      %69 = tpu.matmul %66, %68, %cst_28 {dimension_numbers = #tpu.dot_dimension_numbers<[1], [0], [0], [1], [0, 0, 1, 1], [], []>} : vector<8x64xbf16>, vector<64x64xbf16>, vector<8x64xf32> -> vector<8x64xf32>
      %70 = arith.addf %65, %69 : vector<8x64xf32>
      %71 = vector.broadcast %16 : vector<1x64xf32> to vector<8x64xf32>
      %72 = arith.addf %70, %71 : vector<8x64xf32>
      %73 = arith.truncf %72 : vector<8x64xf32> to vector<8x64xbf16>
      %c0_29 = arith.constant 0 : index
      %c0_30 = arith.constant 0 : index
      %c0_31 = arith.constant 0 : index
      %74 = vector.load %arg7[%c0_29, %c0_30, %c0_31] : memref<1x64x128xbf16, #tpu.memory_space<vmem>>, vector<1x64x128xbf16>
      %75 = vector.shape_cast %74 : vector<1x64x128xbf16> to vector<64x128xbf16>
      %cst_32 = arith.constant dense<0.000000e+00> : vector<8x128xf32>
      %76 = tpu.matmul %73, %75, %cst_32 {dimension_numbers = #tpu.dot_dimension_numbers<[1], [0], [0], [1], [0, 0, 1, 1], [], []>} : vector<8x64xbf16>, vector<64x128xbf16>, vector<8x128xf32> -> vector<8x128xf32>
      %77 = vector.broadcast %17 : vector<1x128xf32> to vector<8x128xf32>
      %78 = arith.addf %76, %77 : vector<8x128xf32>
      %cst_33 = arith.constant 0.000000e+00 : f32
      %79 = vector.broadcast %cst_33 : f32 to vector<8x128xf32>
      %80 = arith.maximumf %78, %79 : vector<8x128xf32>
      %81 = arith.truncf %80 : vector<8x128xf32> to vector<8x128xbf16>
      %c0_34 = arith.constant 0 : index
      %c0_35 = arith.constant 0 : index
      %c0_36 = arith.constant 0 : index
      %82 = vector.load %arg8[%c0_34, %c0_35, %c0_36] : memref<1x128x64xbf16, #tpu.memory_space<vmem>>, vector<1x128x64xbf16>
      %83 = vector.shape_cast %82 : vector<1x128x64xbf16> to vector<128x64xbf16>
      %cst_37 = arith.constant dense<0.000000e+00> : vector<8x64xf32>
      %84 = tpu.matmul %81, %83, %cst_37 {dimension_numbers = #tpu.dot_dimension_numbers<[1], [0], [0], [1], [0, 0, 1, 1], [], []>} : vector<8x128xbf16>, vector<128x64xbf16>, vector<8x64xf32> -> vector<8x64xf32>
      %85 = arith.addf %72, %84 : vector<8x64xf32>
      %86 = vector.broadcast %18 : vector<1x64xf32> to vector<8x64xf32>
      %87 = arith.addf %85, %86 : vector<8x64xf32>
      %88 = arith.truncf %87 : vector<8x64xf32> to vector<8x64xbf16>
      %c0_38 = arith.constant 0 : index
      %c0_39 = arith.constant 0 : index
      %c0_40 = arith.constant 0 : index
      %89 = vector.load %arg9[%c0_38, %c0_39, %c0_40] : memref<1x64x64xbf16, #tpu.memory_space<vmem>>, vector<1x64x64xbf16>
      %90 = vector.shape_cast %89 : vector<1x64x64xbf16> to vector<64x64xbf16>
      %cst_41 = arith.constant dense<0.000000e+00> : vector<8x64xf32>
      %91 = tpu.matmul %88, %90, %cst_41 {dimension_numbers = #tpu.dot_dimension_numbers<[1], [0], [0], [1], [0, 0, 1, 1], [], []>} : vector<8x64xbf16>, vector<64x64xbf16>, vector<8x64xf32> -> vector<8x64xf32>
      %92 = vector.broadcast %19 : vector<1x64xf32> to vector<8x64xf32>
      %93 = arith.addf %91, %92 : vector<8x64xf32>
      %94 = math.tanh %93 : vector<8x64xf32>
      %95 = arith.truncf %94 : vector<8x64xf32> to vector<8x64xbf16>
      %c0_42 = arith.constant 0 : index
      %c0_43 = arith.constant 0 : index
      %c0_44 = arith.constant 0 : index
      %96 = vector.load %arg10[%c0_42, %c0_43, %c0_44] : memref<1x64x64xbf16, #tpu.memory_space<vmem>>, vector<1x64x64xbf16>
      %97 = vector.shape_cast %96 : vector<1x64x64xbf16> to vector<64x64xbf16>
      %cst_45 = arith.constant dense<0.000000e+00> : vector<8x64xf32>
      %98 = tpu.matmul %95, %97, %cst_45 {dimension_numbers = #tpu.dot_dimension_numbers<[1], [0], [0], [1], [0, 0, 1, 1], [], []>} : vector<8x64xbf16>, vector<64x64xbf16>, vector<8x64xf32> -> vector<8x64xf32>
      %99 = vector.broadcast %20 : vector<1x64xf32> to vector<8x64xf32>
      %100 = arith.addf %98, %99 : vector<8x64xf32>
      %101 = math.tanh %100 : vector<8x64xf32>
      %102 = vector.broadcast %21 : vector<1x64xf32> to vector<8x64xf32>
      %103 = arith.mulf %101, %102 : vector<8x64xf32>
      %cst_46 = arith.constant dense<0.000000e+00> : vector<8xf32>
      %104 = vector.multi_reduction <add>, %103, %cst_46 [1] : vector<8x64xf32> to vector<8xf32>
      %105 = vector.shape_cast %104 : vector<8xf32> to vector<8x1xf32>
      %106 = vector.broadcast %22 : vector<1x1xf32> to vector<8x1xf32>
      %107 = arith.addf %105, %106 : vector<8x1xf32>
      %c0_i32_47 = arith.constant 0 : i32
      %108 = vector.broadcast %c0_i32_47 : i32 to vector<8x1xi32>
      %109 = arith.cmpi sgt, %11, %108 : vector<8x1xi32>
      %cst_48 = arith.constant 0.000000e+00 : f32
      %110 = vector.broadcast %cst_48 : f32 to vector<8x1xf32>
      %111 = arith.select %109, %107, %110 : vector<8x1xi1>, vector<8x1xf32>
      %c0_49 = arith.constant 0 : index
      %c0_50 = arith.constant 0 : index
      %c0_51 = arith.constant 0 : index
      %112 = vector.load %arg12[%c0_49, %c0_50, %c0_51] : memref<1x8x1xf32, #tpu.memory_space<vmem>>, vector<1x8x1xf32>
      %113 = vector.shape_cast %112 : vector<1x8x1xf32> to vector<8x1xf32>
      %114 = vector.shape_cast %111 : vector<8x1xf32> to vector<1x8x1xf32>
      tpu.vector_store %arg12[%c0_49, %c0_50, %c0_51], %114 {strides = array<i32>} : memref<1x8x1xf32, #tpu.memory_space<vmem>>, vector<1x8x1xf32>,
    } else {
    }
    return
  }
  func.func @transform_0(%arg0: i32, %arg1: memref<4xi32, #tpu.memory_space<smem>>) -> (i32, i32, i32, i32) {
    %c0_i32 = arith.constant 0 : i32
    %c0_i32_0 = arith.constant 0 : i32
    %c0_i32_1 = arith.constant 0 : i32
    %c0_i32_2 = arith.constant 0 : i32
    return %arg0, %c0_i32, %c0_i32_0, %c0_i32_1 : i32, i32, i32, i32
  }
  func.func @transform_1(%arg0: i32, %arg1: memref<4xi32, #tpu.memory_space<smem>>) -> (i32, i32, i32) {
    %c0_i32 = arith.constant 0 : i32
    %c0_i32_0 = arith.constant 0 : i32
    %c0_i32_1 = arith.constant 0 : i32
    return %arg0, %c0_i32, %c0_i32_0 : i32, i32, i32
  }
  func.func @transform_2(%arg0: i32, %arg1: memref<4xi32, #tpu.memory_space<smem>>) -> (i32, i32, i32) {
    %c0_i32 = arith.constant 0 : i32
    %c0_i32_0 = arith.constant 0 : i32
    %c0_i32_1 = arith.constant 0 : i32
    return %arg0, %c0_i32, %c0_i32_0 : i32, i32, i32
  }
  func.func @transform_3(%arg0: i32, %arg1: memref<4xi32, #tpu.memory_space<smem>>) -> (i32, i32, i32) {
    %c0_i32 = arith.constant 0 : i32
    %c0_i32_0 = arith.constant 0 : i32
    %c0_i32_1 = arith.constant 0 : i32
    return %arg0, %c0_i32, %c0_i32_0 : i32, i32, i32
  }
  func.func @transform_4(%arg0: i32, %arg1: memref<4xi32, #tpu.memory_space<smem>>) -> (i32, i32, i32) {
    %c0_i32 = arith.constant 0 : i32
    %c0_i32_0 = arith.constant 0 : i32
    %c0_i32_1 = arith.constant 0 : i32
    return %arg0, %c0_i32, %c0_i32_0 : i32, i32, i32
  }
  func.func @transform_5(%arg0: i32, %arg1: memref<4xi32, #tpu.memory_space<smem>>) -> (i32, i32, i32) {
    %c0_i32 = arith.constant 0 : i32
    %c0_i32_0 = arith.constant 0 : i32
    %c0_i32_1 = arith.constant 0 : i32
    return %arg0, %c0_i32, %c0_i32_0 : i32, i32, i32
  }
  func.func @transform_6(%arg0: i32, %arg1: memref<4xi32, #tpu.memory_space<smem>>) -> (i32, i32, i32) {
    %c0_i32 = arith.constant 0 : i32
    %c0_i32_0 = arith.constant 0 : i32
    %c0_i32_1 = arith.constant 0 : i32
    return %arg0, %c0_i32, %c0_i32_0 : i32, i32, i32
  }
  func.func @transform_7(%arg0: i32, %arg1: memref<4xi32, #tpu.memory_space<smem>>) -> (i32, i32, i32) {
    %c0_i32 = arith.constant 0 : i32
    %c0_i32_0 = arith.constant 0 : i32
    %c0_i32_1 = arith.constant 0 : i32
    return %arg0, %c0_i32, %c0_i32_0 : i32, i32, i32
  }
  func.func @transform_8(%arg0: i32, %arg1: memref<4xi32, #tpu.memory_space<smem>>) -> (i32, i32, i32) {
    %c0_i32 = arith.constant 0 : i32
    %c0_i32_0 = arith.constant 0 : i32
    %c0_i32_1 = arith.constant 0 : i32
    return %arg0, %c0_i32, %c0_i32_0 : i32, i32, i32
  }
  func.func @transform_9(%arg0: i32, %arg1: memref<4xi32, #tpu.memory_space<smem>>) -> (i32, i32, i32) {
    %c0_i32 = arith.constant 0 : i32
    %c0_i32_0 = arith.constant 0 : i32
    %c0_i32_1 = arith.constant 0 : i32
    return %arg0, %c0_i32, %c0_i32_0 : i32, i32, i32
  }
  func.func @transform_10(%arg0: i32, %arg1: memref<4xi32, #tpu.memory_space<smem>>) -> (i32, i32, i32) {
    %c0_i32 = arith.constant 0 : i32
    %c0_i32_0 = arith.constant 0 : i32
    %c0_i32_1 = arith.constant 0 : i32
    return %arg0, %c0_i32, %c0_i32_0 : i32, i32, i32
  }
}

</mosaic_0001>

<llo_original>
// kernel: _stages_forward_impl.1
$region0: #{_stages_forward_impl.1}
  #allocation0 [shape = 'u32[]', space=smem, size = 0x4, offset = 0x4, fixed_abs, tag = 'smem constant byte address 0x4 - core index']
  #allocation1 [shape = 'u32[144,128]{1,0:T(1,128)}', space=vmem, size = 0x12000, scoped, tag = 'internal scratch']
  #allocation2 [shape = 's32[1]{0}', space=sflag, size = 0x4, scoped, tag = 'scoped memory for _stages_forward_impl.1']
  #allocation3 [shape = 'u8[512]{0}', space=smem, size = 0x200, scoped, tag = 'prefetched SMEM operand 0']
  %s0 = inlined_call_operand.vmem [shape: s32[4], index: 0, kind: input, shape index: {}]
  %s1 = inlined_call_operand.vmem [shape: f32[4,8,8,32], index: 1, kind: input, shape index: {}]
  %s2 = inlined_call_operand.vmem [shape: s32[4,8,1], index: 2, kind: input, shape index: {}]
  %s3 = inlined_call_operand.hbm [shape: bf16[4,32,64], index: 3, kind: input, shape index: {}]
  %s4 = inlined_call_operand.hbm [shape: bf16[4,32,64], index: 4, kind: input, shape index: {}]
  %s5 = inlined_call_operand.vmem [shape: bf16[4,64,64], index: 5, kind: input, shape index: {}]
  %s6 = inlined_call_operand.hbm [shape: bf16[4,64,128], index: 6, kind: input, shape index: {}]
  %s7 = inlined_call_operand.vmem [shape: bf16[4,128,64], index: 7, kind: input, shape index: {}]
  %s8 = inlined_call_operand.hbm [shape: bf16[4,64,64], index: 8, kind: input, shape index: {}]
  %s9 = inlined_call_operand.hbm [shape: bf16[4,64,64], index: 9, kind: input, shape index: {}]
  %s10 = inlined_call_operand.vmem [shape: f32[4,8,128], index: 10, kind: input, shape index: {}]
  %s11 = inlined_call_operand.vmem [shape: f32[4,8,1], index: 11, kind: output, shape index: {}]
  %s12 = sld [smem:[#allocation0]]
  $region101: #{_stages_forward_impl.1} parent=0
    _
  %s14 = ssub.s32 1, %s12
  %s15 = scalar_select 0, %s14, %s12
  %s16 = sshll.u32 %s0, 4
  %s17 = int_to_ptr.vmem [resolvable:$true] %s16
  %19 = dma.vmem_to_smem %s17, 16, [#allocation3], [#allocation2]
  %20 = dma.done [#allocation2], 16
  %21 = sfence
  $region1: #{_stages_forward_impl.1} parent=0
    #allocation4 [shape = 'u8[16384]{0}', space=vmem, size = 0x4000, scoped, tag = 'input window, operand 3']
    #allocation5 [shape = 's32[2]{0}', space=sflag, size = 0x8, scoped, tag = 'scoped memory for _stages_forward_impl.1']
    #allocation6 [shape = 'u8[16384]{0}', space=vmem, size = 0x4000, scoped, tag = 'input window, operand 4']
    #allocation7 [shape = 's32[2]{0}', space=sflag, size = 0x8, scoped, tag = 'scoped memory for _stages_forward_impl.1']
    #allocation8 [shape = 'u8[32768]{0}', space=vmem, size = 0x8000, scoped, tag = 'input window, operand 6']
    #allocation9 [shape = 'u8[32768]{0}', space=vmem, size = 0x8000, scoped, tag = 'input window, operand 8']
    #allocation10 [shape = 's32[2]{0}', space=sflag, size = 0x8, scoped, tag = 'scoped memory for _stages_forward_impl.1']
    #allocation11 [shape = 'u8[32768]{0}', space=vmem, size = 0x8000, scoped, tag = 'input window, operand 9']
    %22 = vsyncpa [#allocation5], 0
    %s23 = scalar_lea.sflag [#allocation5], 1
    %24 = vsyncpa %s23, 0
    %25 = vsyncpa [#allocation7], 0
    %s26 = scalar_lea.sflag [#allocation7], 1
    %27 = vsyncpa %s26, 0
    %28 = vsyncpa [#allocation10], 0
    %s29 = scalar_lea.sflag [#allocation10], 1
    %30 = vsyncpa %s29, 0
    loop: start=0, step=1, limit=6
    $region2: #{_stages_forward_impl.1} parent=1 // loop_pre_header
      _
    $region3: #{_stages_forward_impl.1} parent=1 // loop_header
      %s32 = sphi 0, %s36
      %p33 = scmp.ge.s32.totalorder %s32, 6
      %s42 = sphi 0, %s44
      %s45 = sphi 0, %s42
      %s46 = sphi 0, %s45
      %s62 = sphi 0, %s46
      %s68 = sphi 0, %s70
      %s71 = sphi 0, %s68
      %s72 = sphi 0, %s71
      %s88 = sphi 0, %s72
      %s94 = sphi 0, %s96
      %s97 = sphi 0, %s94
      %s98 = sphi 0, %s97
      %s114 = sphi 0, %s98
      %s120 = sphi 0, %s122
      %s123 = sphi 0, %s120
      %s124 = sphi 0, %s123
      %s140 = sphi 0, %s124
      %s146 = sphi 0, %s148
      %s149 = sphi 0, %s146
      %s150 = sphi 0, %s149
      %s166 = sphi 0, %s150
      %s172 = sphi 0, %s174
      %s175 = sphi 0, %s172
      %s176 = sphi 0, %s175
      %s192 = sphi 0, %s176
      %s198 = sphi 0, %s200
      %s201 = sphi 0, %s198
      %s202 = sphi 0, %s201
      %s218 = sphi 0, %s202
      %s224 = sphi 0, %s226
      %s227 = sphi 0, %s224
      %s228 = sphi 0, %s227
      %s244 = sphi 0, %s228
      %s250 = sphi 0, %s252
      %s253 = sphi 0, %s250
      %s254 = sphi 0, %s253
      %s270 = sphi 0, %s254
      %s276 = sphi 0, %s278
      %s279 = sphi 0, %s276
      %s280 = sphi 0, %s279
      %s296 = sphi 0, %s280
      %s302 = sphi 0, %s304
      %s305 = sphi 0, %s302
      %s306 = sphi 0, %s305
      %s322 = sphi 0, %s306
    $region4: #{_stages_forward_impl.1} parent=1 // loop_header_branch
      %35 = sbr.rel (%p33) target = $region8
    $region5: #{_stages_forward_impl.1} parent=1 // loop_body
      %s37 = ssub.s32 %s32, 1
      %s38 = ssub.s32 %s32, 2
      %s39 = sadd.s32 %s32, 1
      %s40 = ssub.s32 %s32, %s39
      %p41 = scmp.eq.s32.totalorder %s40, 0
      %s43 = sadd.s32 %s42, 1
      %s44 = scalar_select %p41, %s42, %s43
      %p47 = pneg %p41
      %p48 = scmp.eq.s32.totalorder %s32, 3
      %p49 = por %p47, %p48
      %p50 = scmp.ne.s32.totalorder %s42, %s45
      %p51 = scmp.eq.s32.totalorder %s32, 0
      %p52 = por %p50, %p51
      %p53 = scmp.ne.s32.totalorder %s42, %s45
      %p54 = scmp.eq.s32.totalorder %s37, 3
      %p55 = por %p53, %p54
      %p56 = scmp.ne.s32.totalorder %s45, %s46
      %p57 = scmp.eq.s32.totalorder %s37, 0
      %p58 = por %p56, %p57
      %p59 = scmp.ne.s32.totalorder %s45, %s46
      %p60 = scmp.eq.s32.totalorder %s38, 3
      %p61 = por %p59, %p60
      %p63 = scmp.ne.s32.totalorder %s46, %s62
      %p64 = scmp.eq.s32.totalorder %s38, 0
      %p65 = por %p63, %p64
      %s66 = ssub.s32 %s32, %s39
      %p67 = scmp.eq.s32.totalorder %s66, 0
      %s69 = sadd.s32 %s68, 1
      %s70 = scalar_select %p67, %s68, %s69
      %p73 = pneg %p67
      %p74 = scmp.eq.s32.totalorder %s32, 3
      %p75 = por %p73, %p74
      %p76 = scmp.ne.s32.totalorder %s68, %s71
      %p77 = scmp.eq.s32.totalorder %s32, 0
      %p78 = por %p76, %p77
      %p79 = scmp.ne.s32.totalorder %s68, %s71
      %p80 = scmp.eq.s32.totalorder %s37, 3
      %p81 = por %p79, %p80
      %p82 = scmp.ne.s32.totalorder %s71, %s72
      %p83 = scmp.eq.s32.totalorder %s37, 0
      %p84 = por %p82, %p83
      %p85 = scmp.ne.s32.totalorder %s71, %s72
      %p86 = scmp.eq.s32.totalorder %s38, 3
      %p87 = por %p85, %p86
      %p89 = scmp.ne.s32.totalorder %s72, %s88
      %p90 = scmp.eq.s32.totalorder %s38, 0
      %p91 = por %p89, %p90
      %s92 = ssub.s32 %s32, %s39
      %p93 = scmp.eq.s32.totalorder %s92, 0
      %s95 = sadd.s32 %s94, 1
      %s96 = scalar_select %p93, %s94, %s95
      %p99 = pneg %p93
      %p100 = scmp.eq.s32.totalorder %s32, 3
      %p101 = por %p99, %p100
      %p102 = scmp.ne.s32.totalorder %s94, %s97
      %p103 = scmp.eq.s32.totalorder %s32, 0
      %p104 = por %p102, %p103
      %p105 = scmp.ne.s32.totalorder %s94, %s97
      %p106 = scmp.eq.s32.totalorder %s37, 3
      %p107 = por %p105, %p106
      %p108 = scmp.ne.s32.totalorder %s97, %s98
      %p109 = scmp.eq.s32.totalorder %s37, 0
      %p110 = por %p108, %p109
      %p111 = scmp.ne.s32.totalorder %s97, %s98
      %p112 = scmp.eq.s32.totalorder %s38, 3
      %p113 = por %p111, %p112
      %p115 = scmp.ne.s32.totalorder %s98, %s114
      %p116 = scmp.eq.s32.totalorder %s38, 0
      %p117 = por %p115, %p116
      %s118 = ssub.s32 %s32, %s39
      %p119 = scmp.eq.s32.totalorder %s118, 0
      %s121 = sadd.s32 %s120, 1
      %s122 = scalar_select %p119, %s120, %s121
      %p125 = pneg %p119
      %p126 = scmp.eq.s32.totalorder %s32, 3
      %p127 = por %p125, %p126
      %p128 = scmp.ne.s32.totalorder %s120, %s123
      %p129 = scmp.eq.s32.totalorder %s32, 0
      %p130 = por %p128, %p129
      %p131 = scmp.ne.s32.totalorder %s120, %s123
      %p132 = scmp.eq.s32.totalorder %s37, 3
      %p133 = por %p131, %p132
      %p134 = scmp.ne.s32.totalorder %s123, %s124
      %p135 = scmp.eq.s32.totalorder %s37, 0
      %p136 = por %p134, %p135
      %p137 = scmp.ne.s32.totalorder %s123, %s124
      %p138 = scmp.eq.s32.totalorder %s38, 3
      %p139 = por %p137, %p138
      %p141 = scmp.ne.s32.totalorder %s124, %s140
      %p142 = scmp.eq.s32.totalorder %s38, 0
      %p143 = por %p141, %p142
      %s144 = ssub.s32 %s32, %s39
      %p145 = scmp.eq.s32.totalorder %s144, 0
      %s147 = sadd.s32 %s146, 1
      %s148 = scalar_select %p145, %s146, %s147
      %p151 = pneg %p145
      %p152 = scmp.eq.s32.totalorder %s32, 3
      %p153 = por %p151, %p152
      %p154 = scmp.ne.s32.totalorder %s146, %s149
      %p155 = scmp.eq.s32.totalorder %s32, 0
      %p156 = por %p154, %p155
      %p157 = scmp.ne.s32.totalorder %s146, %s149
      %p158 = scmp.eq.s32.totalorder %s37, 3
      %p159 = por %p157, %p158
      %p160 = scmp.ne.s32.totalorder %s149, %s150
      %p161 = scmp.eq.s32.totalorder %s37, 0
      %p162 = por %p160, %p161
      %p163 = scmp.ne.s32.totalorder %s149, %s150
      %p164 = scmp.eq.s32.totalorder %s38, 3
      %p165 = por %p163, %p164
      %p167 = scmp.ne.s32.totalorder %s150, %s166
      %p168 = scmp.eq.s32.totalorder %s38, 0
      %p169 = por %p167, %p168
      %s170 = ssub.s32 %s32, %s39
      %p171 = scmp.eq.s32.totalorder %s170, 0
      %s173 = sadd.s32 %s172, 1
      %s174 = scalar_select %p171, %s172, %s173
      %p177 = pneg %p171
      %p178 = scmp.eq.s32.totalorder %s32, 3
      %p179 = por %p177, %p178
      %p180 = scmp.ne.s32.totalorder %s172, %s175
      %p181 = scmp.eq.s32.totalorder %s32, 0
      %p182 = por %p180, %p181
      %p183 = scmp.ne.s32.totalorder %s172, %s175
      %p184 = scmp.eq.s32.totalorder %s37, 3
      %p185 = por %p183, %p184
      %p186 = scmp.ne.s32.totalorder %s175, %s176
      %p187 = scmp.eq.s32.totalorder %s37, 0
      %p188 = por %p186, %p187
      %p189 = scmp.ne.s32.totalorder %s175, %s176
      %p190 = scmp.eq.s32.totalorder %s38, 3
      %p191 = por %p189, %p190
      %p193 = scmp.ne.s32.totalorder %s176, %s192
      %p194 = scmp.eq.s32.totalorder %s38, 0
      %p195 = por %p193, %p194
      %s196 = ssub.s32 %s32, %s39
      %p197 = scmp.eq.s32.totalorder %s196, 0
      %s199 = sadd.s32 %s198, 1
      %s200 = scalar_select %p197, %s198, %s199
      %p203 = pneg %p197
      %p204 = scmp.eq.s32.totalorder %s32, 3
      %p205 = por %p203, %p204
      %p206 = scmp.ne.s32.totalorder %s198, %s201
      %p207 = scmp.eq.s32.totalorder %s32, 0
      %p208 = por %p206, %p207
      %p209 = scmp.ne.s32.totalorder %s198, %s201
      %p210 = scmp.eq.s32.totalorder %s37, 3
      %p211 = por %p209, %p210
      %p212 = scmp.ne.s32.totalorder %s201, %s202
      %p213 = scmp.eq.s32.totalorder %s37, 0
      %p214 = por %p212, %p213
      %p215 = scmp.ne.s32.totalorder %s201, %s202
      %p216 = scmp.eq.s32.totalorder %s38, 3
      %p217 = por %p215, %p216
      %p219 = scmp.ne.s32.totalorder %s202, %s218
      %p220 = scmp.eq.s32.totalorder %s38, 0
      %p221 = por %p219, %p220
      %s222 = ssub.s32 %s32, %s39
      %p223 = scmp.eq.s32.totalorder %s222, 0
      %s225 = sadd.s32 %s224, 1
      %s226 = scalar_select %p223, %s224, %s225
      %p229 = pneg %p223
      %p230 = scmp.eq.s32.totalorder %s32, 3
      %p231 = por %p229, %p230
      %p232 = scmp.ne.s32.totalorder %s224, %s227
      %p233 = scmp.eq.s32.totalorder %s32, 0
      %p234 = por %p232, %p233
      %p235 = scmp.ne.s32.totalorder %s224, %s227
      %p236 = scmp.eq.s32.totalorder %s37, 3
      %p237 = por %p235, %p236
      %p238 = scmp.ne.s32.totalorder %s227, %s228
      %p239 = scmp.eq.s32.totalorder %s37, 0
      %p240 = por %p238, %p239
      %p241 = scmp.ne.s32.totalorder %s227, %s228
      %p242 = scmp.eq.s32.totalorder %s38, 3
      %p243 = por %p241, %p242
      %p245 = scmp.ne.s32.totalorder %s228, %s244
      %p246 = scmp.eq.s32.totalorder %s38, 0
      %p247 = por %p245, %p246
      %s248 = ssub.s32 %s32, %s39
      %p249 = scmp.eq.s32.totalorder %s248, 0
      %s251 = sadd.s32 %s250, 1
      %s252 = scalar_select %p249, %s250, %s251
      %p255 = pneg %p249
      %p256 = scmp.eq.s32.totalorder %s32, 3
      %p257 = por %p255, %p256
      %p258 = scmp.ne.s32.totalorder %s250, %s253
      %p259 = scmp.eq.s32.totalorder %s32, 0
      %p260 = por %p258, %p259
      %p261 = scmp.ne.s32.totalorder %s250, %s253
      %p262 = scmp.eq.s32.totalorder %s37, 3
      %p263 = por %p261, %p262
      %p264 = scmp.ne.s32.totalorder %s253, %s254
      %p265 = scmp.eq.s32.totalorder %s37, 0
      %p266 = por %p264, %p265
      %p267 = scmp.ne.s32.totalorder %s253, %s254
      %p268 = scmp.eq.s32.totalorder %s38, 3
      %p269 = por %p267, %p268
      %p271 = scmp.ne.s32.totalorder %s254, %s270
      %p272 = scmp.eq.s32.totalorder %s38, 0
      %p273 = por %p271, %p272
      %s274 = ssub.s32 %s32, %s39
      %p275 = scmp.eq.s32.totalorder %s274, 0
      %s277 = sadd.s32 %s276, 1
      %s278 = scalar_select %p275, %s276, %s277
      %p281 = pneg %p275
      %p282 = scmp.eq.s32.totalorder %s32, 3
      %p283 = por %p281, %p282
      %p284 = scmp.ne.s32.totalorder %s276, %s279
      %p285 = scmp.eq.s32.totalorder %s32, 0
      %p286 = por %p284, %p285
      %p287 = scmp.ne.s32.totalorder %s276, %s279
      %p288 = scmp.eq.s32.totalorder %s37, 3
      %p289 = por %p287, %p288
      %p290 = scmp.ne.s32.totalorder %s279, %s280
      %p291 = scmp.eq.s32.totalorder %s37, 0
      %p292 = por %p290, %p291
      %p293 = scmp.ne.s32.totalorder %s279, %s280
      %p294 = scmp.eq.s32.totalorder %s38, 3
      %p295 = por %p293, %p294
      %p297 = scmp.ne.s32.totalorder %s280, %s296
      %p298 = scmp.eq.s32.totalorder %s38, 0
      %p299 = por %p297, %p298
      %s300 = ssub.s32 %s32, %s39
      %p301 = scmp.eq.s32.totalorder %s300, 0
      %s303 = sadd.s32 %s302, 1
      %s304 = scalar_select %p301, %s302, %s303
      %p307 = pneg %p301
      %p308 = scmp.eq.s32.totalorder %s32, 3
      %p309 = por %p307, %p308
      %p310 = scmp.ne.s32.totalorder %s302, %s305
      %p311 = scmp.eq.s32.totalorder %s32, 0
      %p312 = por %p310, %p311
      %p313 = scmp.ne.s32.totalorder %s302, %s305
      %p314 = scmp.eq.s32.totalorder %s37, 3
      %p315 = por %p313, %p314
      %p316 = scmp.ne.s32.totalorder %s305, %s306
      %p317 = scmp.eq.s32.totalorder %s37, 0
      %p318 = por %p316, %p317
      %p319 = scmp.ne.s32.totalorder %s305, %s306
      %p320 = scmp.eq.s32.totalorder %s38, 3
      %p321 = por %p319, %p320
      %p323 = scmp.ne.s32.totalorder %s306, %s322
      %p324 = scmp.eq.s32.totalorder %s38, 0
      %p325 = por %p323, %p324
      %p326 = scmp.le.s32.totalorder 1, %s32
      %p327 = scmp.lt.s32.totalorder %s32, 5
      %p328 = pnand %p326, %p327
      %p329 = pneg %p328
      // Predicated region
      $region9: #{_stages_forward_impl.1} parent=5 // pred_check
        _
      $region10: #{_stages_forward_impl.1} parent=5 // pred_check_branch
        %331 = sbr.rel (%p328) target = $region12
      $region11: #{_stages_forward_impl.1} parent=5 // pred_region
        %s332 = ssub.s32 %s32, 1
      $region12: #{_stages_forward_impl.1} parent=5 // pred_fallthru
        _
      %p333 = scmp.lt.s32.totalorder %s32, 4
      // Predicated region
      $region13: #{_stages_forward_impl.1} parent=5 // pred_check
        %p334 = pneg %p333
      $region14: #{_stages_forward_impl.1} parent=5 // pred_check_branch
        %336 = sbr.rel (%p334) target = $region16
      $region15: #{_stages_forward_impl.1} parent=5 // pred_region
        // Predicated region
        $region17: #{_stages_forward_impl.1} parent=15 // pred_check
          %p337 = pneg %p52
        $region18: #{_stages_forward_impl.1} parent=15 // pred_check_branch
          %339 = sbr.rel (%p337) target = $region20
        $region19: #{_stages_forward_impl.1} parent=15 // pred_region
          %p340 = scmp.lt.s32.totalorder %s32, 3
          %s341 = scalar_select %p340, %s32, 3
          %s342 = smul.addr %s341, 8
          %s343 = smul.addr %s342, 8
          %s344 = scalar_lea.vmem %s1, %s343
        $region20: #{_stages_forward_impl.1} parent=15 // pred_fallthru
          _
        // Predicated region
        $region21: #{_stages_forward_impl.1} parent=15 // pred_check
          %p345 = pneg %p78
        $region22: #{_stages_forward_impl.1} parent=15 // pred_check_branch
          %347 = sbr.rel (%p345) target = $region24
        $region23: #{_stages_forward_impl.1} parent=15 // pred_region
          %p348 = scmp.lt.s32.totalorder %s32, 3
          %s349 = scalar_select %p348, %s32, 3
          %s350 = smul.addr %s349, 8
          %s351 = scalar_lea.vmem %s2, %s350
        $region24: #{_stages_forward_impl.1} parent=15 // pred_fallthru
          _
        // Predicated region
        $region25: #{_stages_forward_impl.1} parent=15 // pred_check
          %p352 = pneg %p104
        $region26: #{_stages_forward_impl.1} parent=15 // pred_check_branch
          %354 = sbr.rel (%p352) target = $region28
        $region27: #{_stages_forward_impl.1} parent=15 // pred_region
          %s355 = sand.u32 %s94, 1
          %s356 = scalar_lea.sflag [#allocation5], %s355
          %s357 = sand.u32 %s94, 1
          %s358 = smul.addr %s357, 16
          %s359 = scalar_lea.vmem [#allocation4], %s358
          %s361 = ssub.s32 256, 256
          %362 = vsyncadd %s356, %s361
          %s363 = smul.addr %s32, 4
          %s364 = smul.addr %s363, 64
          %s365 = scalar_lea.hbm %s3, %s364
          %s366 = sshll.u32 %s359, 4
          %s367 = int_to_ptr.vmem [resolvable:$true] %s366
          %372 = dma.hbm_to_vmem [thread:$0]  %s365, 256, %s367, %s356, 64, 64, 4
        $region28: #{_stages_forward_impl.1} parent=15 // pred_fallthru
          _
        // Predicated region
        $region29: #{_stages_forward_impl.1} parent=15 // pred_check
          %p373 = pneg %p130
        $region30: #{_stages_forward_impl.1} parent=15 // pred_check_branch
          %375 = sbr.rel (%p373) target = $region32
        $region31: #{_stages_forward_impl.1} parent=15 // pred_region
          %s376 = sand.u32 %s32, 1
          %s377 = scalar_lea.sflag [#allocation7], %s376
          %s378 = sand.u32 %s120, 1
          %s379 = smul.addr %s378, 16
          %s380 = scalar_lea.vmem [#allocation6], %s379
          %s382 = ssub.s32 256, 256
          %383 = vsyncadd %s377, %s382
          %s384 = smul.addr %s32, 4
          %s385 = smul.addr %s384, 64
          %s386 = scalar_lea.hbm %s4, %s385
          %s387 = sshll.u32 %s380, 4
          %s388 = int_to_ptr.vmem [resolvable:$true] %s387
          %393 = dma.hbm_to_vmem [thread:$0]  %s386, 256, %s388, %s377, 64, 64, 4
        $region32: #{_stages_forward_impl.1} parent=15 // pred_fallthru
          _
        // Predicated region
        $region33: #{_stages_forward_impl.1} parent=15 // pred_check
          %p394 = pneg %p156
        $region34: #{_stages_forward_impl.1} parent=15 // pred_check_branch
          %396 = sbr.rel (%p394) target = $region36
        $region35: #{_stages_forward_impl.1} parent=15 // pred_region
          %p397 = scmp.lt.s32.totalorder %s32, 3
          %s398 = scalar_select %p397, %s32, 3
          %s399 = smul.addr %s398, 8
          %s400 = smul.addr %s399, 4
          %s401 = scalar_lea.vmem %s5, %s400
        $region36: #{_stages_forward_impl.1} parent=15 // pred_fallthru
          _
        // Predicated region
        $region37: #{_stages_forward_impl.1} parent=15 // pred_check
          %p402 = pneg %p182
        $region38: #{_stages_forward_impl.1} parent=15 // pred_check_branch
          %404 = sbr.rel (%p402) target = $region40
        $region39: #{_stages_forward_impl.1} parent=15 // pred_region
          %s405 = sand.u32 %s32, 1
          %s406 = scalar_lea.sflag [#allocation7], %s405
          %s407 = sand.u32 %s172, 1
          %s408 = smul.addr %s407, 32
          %s409 = scalar_lea.vmem [#allocation8], %s408
          %s411 = ssub.s32 512, 512
          %412 = vsyncadd %s406, %s411
          %s413 = smul.addr %s32, 8
          %s414 = smul.addr %s413, 64
          %s415 = scalar_lea.hbm %s6, %s414
          %s416 = sshll.u32 %s409, 4
          %s417 = int_to_ptr.vmem [resolvable:$true] %s416
          %422 = dma.hbm_to_vmem [thread:$0]  %s415, 512, %s417, %s406, 64, 64, 4
        $region40: #{_stages_forward_impl.1} parent=15 // pred_fallthru
          _
        // Predicated region
        $region41: #{_stages_forward_impl.1} parent=15 // pred_check
          %p423 = pneg %p208
        $region42: #{_stages_forward_impl.1} parent=15 // pred_check_branch
          %425 = sbr.rel (%p423) target = $region44
        $region43: #{_stages_forward_impl.1} parent=15 // pred_region
          %p426 = scmp.lt.s32.totalorder %s32, 3
          %s427 = scalar_select %p426, %s32, 3
          %s428 = smul.addr %s427, 16
          %s429 = smul.addr %s428, 4
          %s430 = scalar_lea.vmem %s7, %s429
        $region44: #{_stages_forward_impl.1} parent=15 // pred_fallthru
          _
        // Predicated region
        $region45: #{_stages_forward_impl.1} parent=15 // pred_check
          %p431 = pneg %p234
        $region46: #{_stages_forward_impl.1} parent=15 // pred_check_branch
          %433 = sbr.rel (%p431) target = $region48
        $region47: #{_stages_forward_impl.1} parent=15 // pred_region
          %s434 = sand.u32 %s32, 1
          %s435 = scalar_lea.sflag [#allocation10], %s434
          %s436 = sand.u32 %s224, 1
          %s437 = smul.addr %s436, 32
          %s438 = scalar_lea.vmem [#allocation9], %s437
          %s440 = ssub.s32 512, 512
          %441 = vsyncadd %s435, %s440
          %s442 = smul.addr %s32, 8
          %s443 = smul.addr %s442, 64
          %s444 = scalar_lea.hbm %s8, %s443
          %s445 = sshll.u32 %s438, 4
          %s446 = int_to_ptr.vmem [resolvable:$true] %s445
          %451 = dma.hbm_to_vmem [thread:$0]  %s444, 512, %s446, %s435, 64, 64, 4
        $region48: #{_stages_forward_impl.1} parent=15 // pred_fallthru
          _
        // Predicated region
        $region49: #{_stages_forward_impl.1} parent=15 // pred_check
          %p452 = pneg %p260
        $region50: #{_stages_forward_impl.1} parent=15 // pred_check_branch
          %454 = sbr.rel (%p452) target = $region52
        $region51: #{_stages_forward_impl.1} parent=15 // pred_region
          %s455 = sand.u32 %s32, 1
          %s456 = scalar_lea.sflag [#allocation10], %s455
          %s457 = sand.u32 %s250, 1
          %s458 = smul.addr %s457, 32
          %s459 = scalar_lea.vmem [#allocation11], %s458
          %s461 = ssub.s32 512, 512
          %462 = vsyncadd %s456, %s461
          %s463 = smul.addr %s32, 8
          %s464 = smul.addr %s463, 64
          %s465 = scalar_lea.hbm %s9, %s464
          %s466 = sshll.u32 %s459, 4
          %s467 = int_to_ptr.vmem [resolvable:$true] %s466
          %472 = dma.hbm_to_vmem [thread:$0]  %s465, 512, %s467, %s456, 64, 64, 4
        $region52: #{_stages_forward_impl.1} parent=15 // pred_fallthru
          _
        // Predicated region
        $region53: #{_stages_forward_impl.1} parent=15 // pred_check
          %p473 = pneg %p286
        $region54: #{_stages_forward_impl.1} parent=15 // pred_check_branch
          %475 = sbr.rel (%p473) target = $region56
        $region55: #{_stages_forward_impl.1} parent=15 // pred_region
          %p476 = scmp.lt.s32.totalorder %s32, 3
          %s477 = scalar_select %p476, %s32, 3
          %s478 = smul.addr %s477, 8
          %s479 = scalar_lea.vmem %s10, %s478
        $region56: #{_stages_forward_impl.1} parent=15 // pred_fallthru
          _
      $region16: #{_stages_forward_impl.1} parent=5 // pred_fallthru
        _
      %p480 = scmp.le.s32.totalorder 1, %s32
      %p481 = scmp.lt.s32.totalorder %s32, 5
      %p482 = pnand %p480, %p481
      %p483 = pneg %p482
      // Predicated region
      $region57: #{_stages_forward_impl.1} parent=5 // pred_check
        _
      $region58: #{_stages_forward_impl.1} parent=5 // pred_check_branch
        %485 = sbr.rel (%p482) target = $region60
      $region59: #{_stages_forward_impl.1} parent=5 // pred_region
        %s486 = ssub.s32 %s32, 1
        %s487 = sand.u32 %s97, 1
        %s488 = scalar_lea.sflag [#allocation5], %s487
        %s489 = sand.u32 %s97, 1
        %s490 = smul.addr %s489, 16
        %s491 = scalar_lea.vmem [#allocation4], %s490
        // Predicated region
        $region61: #{_stages_forward_impl.1} parent=59 // pred_check
          %p492 = pneg %p110
        $region62: #{_stages_forward_impl.1} parent=59 // pred_check_branch
          %494 = sbr.rel (%p492) target = $region64
        $region63: #{_stages_forward_impl.1} parent=59 // pred_region
          %495 = dma.done %s488, 256
        $region64: #{_stages_forward_impl.1} parent=59 // pred_fallthru
          _
        %s496 = sand.u32 %s37, 1
        %s497 = scalar_lea.sflag [#allocation7], %s496
        %s498 = sand.u32 %s123, 1
        %s499 = smul.addr %s498, 16
        %s500 = scalar_lea.vmem [#allocation6], %s499
        // Predicated region
        $region65: #{_stages_forward_impl.1} parent=59 // pred_check
          %p501 = pneg %p136
        $region66: #{_stages_forward_impl.1} parent=59 // pred_check_branch
          %503 = sbr.rel (%p501) target = $region68
        $region67: #{_stages_forward_impl.1} parent=59 // pred_region
          %504 = dma.done %s497, 256
        $region68: #{_stages_forward_impl.1} parent=59 // pred_fallthru
          _
        %s505 = sand.u32 %s37, 1
        %s506 = scalar_lea.sflag [#allocation7], %s505
        %s507 = sand.u32 %s175, 1
        %s508 = smul.addr %s507, 32
        %s509 = scalar_lea.vmem [#allocation8], %s508
        // Predicated region
        $region69: #{_stages_forward_impl.1} parent=59 // pred_check
          %p510 = pneg %p188
        $region70: #{_stages_forward_impl.1} parent=59 // pred_check_branch
          %512 = sbr.rel (%p510) target = $region72
        $region71: #{_stages_forward_impl.1} parent=59 // pred_region
          %513 = dma.done %s506, 512
        $region72: #{_stages_forward_impl.1} parent=59 // pred_fallthru
          _
        %s514 = sand.u32 %s37, 1
        %s515 = scalar_lea.sflag [#allocation10], %s514
        %s516 = sand.u32 %s227, 1
        %s517 = smul.addr %s516, 32
        %s518 = scalar_lea.vmem [#allocation9], %s517
        // Predicated region
        $region73: #{_stages_forward_impl.1} parent=59 // pred_check
          %p519 = pneg %p240
        $region74: #{_stages_forward_impl.1} parent=59 // pred_check_branch
          %521 = sbr.rel (%p519) target = $region76
        $region75: #{_stages_forward_impl.1} parent=59 // pred_region
          %522 = dma.done %s515, 512
        $region76: #{_stages_forward_impl.1} parent=59 // pred_fallthru
          _
        %s523 = sand.u32 %s37, 1
        %s524 = scalar_lea.sflag [#allocation10], %s523
        %s525 = sand.u32 %s253, 1
        %s526 = smul.addr %s525, 32
        %s527 = scalar_lea.vmem [#allocation11], %s526
        // Predicated region
        $region77: #{_stages_forward_impl.1} parent=59 // pred_check
          %p528 = pneg %p266
        $region78: #{_stages_forward_impl.1} parent=59 // pred_check_branch
          %530 = sbr.rel (%p528) target = $region80
        $region79: #{_stages_forward_impl.1} parent=59 // pred_region
          %531 = dma.done %s524, 512
        $region80: #{_stages_forward_impl.1} parent=59 // pred_fallthru
          _
        %p532 = scmp.lt.s32.totalorder %s37, 3
        %s533 = scalar_select %p532, %s37, 3
        %s534 = smul.addr %s533, 8
        %s535 = smul.addr %s534, 8
        %s536 = scalar_lea.vmem %s1, %s535
        %p537 = pneg %p58
        %p538 = pneg %p55
        %p539 = scmp.lt.s32.totalorder %s37, 3
        %s540 = scalar_select %p539, %s37, 3
        %s541 = smul.addr %s540, 8
        %s542 = scalar_lea.vmem %s2, %s541
        %p543 = pneg %p84
        %p544 = pneg %p81
        %s545 = sand.u32 %s97, 1
        %s546 = scalar_lea.sflag [#allocation5], %s545
        %s547 = sand.u32 %s97, 1
        %s548 = smul.addr %s547, 16
        %s549 = scalar_lea.vmem [#allocation4], %s548
        %p550 = pneg %p110
        %p551 = pneg %p107
        %s552 = sand.u32 %s37, 1
        %s553 = scalar_lea.sflag [#allocation7], %s552
        %s554 = sand.u32 %s123, 1
        %s555 = smul.addr %s554, 16
        %s556 = scalar_lea.vmem [#allocation6], %s555
        %p557 = pneg %p136
        %p558 = pneg %p133
        %p559 = scmp.lt.s32.totalorder %s37, 3
        %s560 = scalar_select %p559, %s37, 3
        %s561 = smul.addr %s560, 8
        %s562 = smul.addr %s561, 4
        %s563 = scalar_lea.vmem %s5, %s562
        %p564 = pneg %p162
        %p565 = pneg %p159
        %s566 = sand.u32 %s37, 1
        %s567 = scalar_lea.sflag [#allocation7], %s566
        %s568 = sand.u32 %s175, 1
        %s569 = smul.addr %s568, 32
        %s570 = scalar_lea.vmem [#allocation8], %s569
        %p571 = pneg %p188
        %p572 = pneg %p185
        %p573 = scmp.lt.s32.totalorder %s37, 3
        %s574 = scalar_select %p573, %s37, 3
        %s575 = smul.addr %s574, 16
        %s576 = smul.addr %s575, 4
        %s577 = scalar_lea.vmem %s7, %s576
        %p578 = pneg %p214
        %p579 = pneg %p211
        %s580 = sand.u32 %s37, 1
        %s581 = scalar_lea.sflag [#allocation10], %s580
        %s582 = sand.u32 %s227, 1
        %s583 = smul.addr %s582, 32
        %s584 = scalar_lea.vmem [#allocation9], %s583
        %p585 = pneg %p240
        %p586 = pneg %p237
        %s587 = sand.u32 %s37, 1
        %s588 = scalar_lea.sflag [#allocation10], %s587
        %s589 = sand.u32 %s253, 1
        %s590 = smul.addr %s589, 32
        %s591 = scalar_lea.vmem [#allocation11], %s590
        %p592 = pneg %p266
        %p593 = pneg %p263
        %p594 = scmp.lt.s32.totalorder %s37, 3
        %s595 = scalar_select %p594, %s37, 3
        %s596 = smul.addr %s595, 8
        %s597 = scalar_lea.vmem %s10, %s596
        %p598 = pneg %p292
        %p599 = pneg %p289
        %p600 = pneg %p318
        %p601 = pneg %p315
        %p602 = scmp.lt.s32.totalorder %s37, 3
        %s603 = scalar_select %p602, %s37, 3
        %s604 = smul.addr %s603, 8
        %s605 = scalar_lea.vmem %s11, %s604
        %p606 = scmp.lt.s32.totalorder %s37, 3
        %s607 = scalar_select %p606, %s37, 3
        %s608 = smul.addr %s607, 8
        %s609 = smul.addr %s608, 8
        %s610 = scalar_lea.vmem %s1, %s609
        %p611 = scmp.lt.s32.totalorder %s37, 3
        %s612 = scalar_select %p611, %s37, 3
        %s613 = smul.addr %s612, 8
        %s614 = scalar_lea.vmem %s2, %s613
        %p615 = scmp.lt.s32.totalorder %s37, 3
        %s616 = scalar_select %p615, %s37, 3
        %s617 = smul.addr %s616, 8
        %s618 = smul.addr %s617, 4
        %s619 = scalar_lea.vmem %s5, %s618
        %p620 = scmp.lt.s32.totalorder %s37, 3
        %s621 = scalar_select %p620, %s37, 3
        %s622 = smul.addr %s621, 16
        %s623 = smul.addr %s622, 4
        %s624 = scalar_lea.vmem %s7, %s623
        %p625 = scmp.lt.s32.totalorder %s37, 3
        %s626 = scalar_select %p625, %s37, 3
        %s627 = smul.addr %s626, 8
        %s628 = scalar_lea.vmem %s10, %s627
        %p629 = scmp.lt.s32.totalorder %s37, 3
        %s630 = scalar_select %p629, %s37, 3
        %s631 = smul.addr %s630, 8
        %s632 = scalar_lea.vmem %s11, %s631
        %s634 = sld [smem:[#allocation3 + %s37]]
        %p635 = scmp.eq.s32.totalorder %s634, 0
        // Predicated region
        $region81: #{_stages_forward_impl.1} parent=59 // pred_check
          %p636 = pneg %p635
        $region82: #{_stages_forward_impl.1} parent=59 // pred_check_branch
          %638 = sbr.rel (%p636) target = $region84
        $region83: #{_stages_forward_impl.1} parent=59 // pred_region
          %vm639 = vcmask 7168
          %640 = vst.msk [vmem:[%s632] sm:$0xff] %vm639, 0.0
        $region84: #{_stages_forward_impl.1} parent=59 // pred_fallthru
          _
        %p641 = scmp.gt.s32.totalorder %s634, 0
        // Predicated region
        $region85: #{_stages_forward_impl.1} parent=59 // pred_check
          %p642 = pneg %p641
        $region86: #{_stages_forward_impl.1} parent=59 // pred_check_branch
          %644 = sbr.rel (%p642) target = $region88
        $region87: #{_stages_forward_impl.1} parent=59 // pred_region
          %v645 = vld [vmem:[%s610] sm:$0xff]
          %v646 = vld [vmem:[%s610 + $0x8] sm:$0xff]
          %v647 = vld [vmem:[%s610 + $0x10] sm:$0xff]
          %v648 = vld [vmem:[%s610 + $0x18] sm:$0xff]
          %v649 = vld [vmem:[%s610 + $0x20] sm:$0xff]
          %v650 = vld [vmem:[%s610 + $0x28] sm:$0xff]
          %v651 = vld [vmem:[%s610 + $0x30] sm:$0xff]
          %v652 = vld [vmem:[%s610 + $0x38] sm:$0xff]
          %v653 = vld [vmem:[%s614] sm:$0xff]
          %v654 = vld [vmem:[%s628] sm:$0xff]
          %v655 = vpack.c.bf16 %v646, %v645
          %v656 = vpack.c.bf16 %v648, %v647
          %v657 = vpack.c.bf16 %v650, %v649
          %v658 = vpack.c.bf16 %v652, %v651
          %v659 = vld [vmem:[%s491] sm:$0xf]
          %v660 = vld [vmem:[%s491 + $0x4] sm:$0xf]
          %v661 = vld [vmem:[%s491 + $0x8] sm:$0xf]
          %v662 = vld [vmem:[%s491 + $0xc] sm:$0xf]
          %v663 = vlaneseq
          %v664 = vshrl.u32 %v663, 7
          %v665 = vsub.s32 0, %v664
          %v666 = vrot.slane %v654, %v665
          %v671 = vunpack.c.l.b16 %v659
          %v672 = vunpack.c.l.b16 %v660
          %v673 = vunpack.c.l.b16 %v661
          %v674 = vunpack.c.l.b16 %v662
          %v675 = vpack.c.b16 %v672, %v671
          %v676 = vpack.c.b16 %v674, %v673
          %vm679 = vcmask 261120
          %v681 = vsel %vm679, %v655, 0
          %v684 = vsel %vm679, %v656, 0
          %v687 = vsel %vm679, %v657, 0
          %v690 = vsel %vm679, %v658, 0
          %692 = vmatprep.subr.bf16.mxu0 0
          %693 = vmatpush1.bf16.msra.mxu0 %v675
          %694 = vmatprep.subr.bf16.mxu0 0
          %695 = vmatpush1.bf16.msra.mxu0 %v676
          %696 = vmatprep.subr.bf16.mxu0 0
          %697 = vmatpush1.bf16.msra.mxu0 0
          %698 = vmatprep.subr.bf16.mxu0 0
          %699 = vmatpush1.bf16.msra.mxu0 0
          %700 = vmatprep.subr.bf16.mxu0 0
          %701 = vmatpush1.bf16.msra.mxu0 0
          %702 = vmatprep.subr.bf16.mxu0 0
          %703 = vmatpush1.bf16.msra.mxu0 0
          %704 = vmatprep.subr.bf16.mxu0 0
          %705 = vmatpush1.bf16.msra.mxu0 0
          %706 = vmatprep.subr.bf16.mxu0 0
          %707 = vmatpush1.bf16.msra.mxu0 0
          %708 = vmatprep.subr.bf16.mxu0 0
          %709 = vmatpush1.bf16.msra.mxu0 0
          %710 = vmatprep.subr.bf16.mxu0 0
          %711 = vmatpush1.bf16.msra.mxu0 0
          %712 = vmatprep.subr.bf16.mxu0 0
          %713 = vmatpush1.bf16.msra.mxu0 0
          %714 = vmatprep.subr.bf16.mxu0 0
          %715 = vmatpush1.bf16.msra.mxu0 0
          %716 = vmatprep.subr.bf16.mxu0 0
          %717 = vmatpush1.bf16.msra.mxu0 0
          %718 = vmatprep.subr.bf16.mxu0 0
          %719 = vmatpush1.bf16.msra.mxu0 0
          %720 = vmatprep.subr.bf16.mxu0 0
          %721 = vmatpush1.bf16.msra.mxu0 0
          %722 = vmatprep.subr.bf16.mxu0 0
          %723 = vmatpush1.bf16.msra.mxu0 0
          %724 = vmatprep.mubr.bf16.mxu0 0
          %725 = vmatmul.mubr.bf16.gmra.mrb[0].mxu0 %v681
          %v726 = vpop.f32.mrb[0].mxu0
          %v727 = vadd.f32 %v666, %v726
          %v728 = vpop.f32.mrb[0].mxu0
          %v729 = vpop.f32.mrb[0].mxu0
          %v730 = vadd.f32 %v666, %v729
          %v731 = vpop.f32.mrb[0].mxu0
          %732 = vmatprep.mubr.bf16.mxu0 0
          %733 = vmatmul.mubr.bf16.gmra.mrb[0].mxu0 %v684
          %v734 = vpop.f32.mrb[0].mxu0
          %v735 = vadd.f32 %v666, %v734
          %v736 = vpop.f32.mrb[0].mxu0
          %v737 = vpop.f32.mrb[0].mxu0
          %v738 = vadd.f32 %v666, %v737
          %v739 = vpop.f32.mrb[0].mxu0
          %740 = vmatprep.mubr.bf16.mxu0 0
          %741 = vmatmul.mubr.bf16.gmra.mrb[0].mxu0 %v687
          %v742 = vpop.f32.mrb[0].mxu0
          %v743 = vadd.f32 %v666, %v742
          %v744 = vpop.f32.mrb[0].mxu0
          %v745 = vpop.f32.mrb[0].mxu0
          %v746 = vadd.f32 %v666, %v745
          %v747 = vpop.f32.mrb[0].mxu0
          %748 = vmatprep.mubr.bf16.mxu0 0
          %749 = vmatmul.mubr.bf16.gmra.mrb[0].mxu0 %v690
          %v750 = vpop.f32.mrb[0].mxu0
          %v751 = vadd.f32 %v666, %v750
          %v752 = vpop.f32.mrb[0].mxu0
          %v753 = vpop.f32.mrb[0].mxu0
          %v754 = vadd.f32 %v666, %v753
          %v755 = vpop.f32.mrb[0].mxu0
          %756 = vdwg.mxu0
          %v757 = vpack.c.bf16 %v645, %v645
          %v758 = vpack.c.bf16 %v646, %v646
          %v759 = vpack.c.bf16 %v647, %v647
          %v760 = vpack.c.bf16 %v648, %v648
          %v761 = vpack.c.bf16 %v649, %v649
          %v762 = vpack.c.bf16 %v650, %v650
          %v763 = vpack.c.bf16 %v651, %v651
          %v764 = vpack.c.bf16 %v652, %v652
          %v765 = vld [vmem:[%s500] sm:$0xf]
          %v766 = vld [vmem:[%s500 + $0x4] sm:$0xf]
          %v767 = vld [vmem:[%s500 + $0x8] sm:$0xf]
          %v768 = vld [vmem:[%s500 + $0xc] sm:$0xf]
          %v769 = vlaneseq
          %v770 = vshrl.u32 %v769, 7
          %v771 = vsub.s32 1, %v770
          %v772 = vrot.slane %v654, %v771
          %v781 = vunpack.c.l.b16 %v757
          %v782 = vunpack.c.l.b16 %v758
          %v783 = vunpack.c.l.b16 %v759
          %v784 = vunpack.c.l.b16 %v760
          %v785 = vunpack.c.l.b16 %v761
          %v786 = vunpack.c.l.b16 %v762
          %v787 = vunpack.c.l.b16 %v763
          %v788 = vunpack.c.l.b16 %v764
          %v789 = vrot.slane %v782, 7
          %vm790 = vcmask 1041409
          %v791 = vsel %vm790, %v789, %v781
          %v792 = vrot.slane %v783, 6
          %vm793 = vcmask 1042434
          %v794 = vsel %vm793, %v792, %v791
          %v795 = vrot.slane %v784, 5
          %vm796 = vcmask 1043459
          %v797 = vsel %vm796, %v795, %v794
          %v798 = vrot.slane %v785, 4
          %vm799 = vcmask 1044484
          %v800 = vsel %vm799, %v798, %v797
          %v801 = vrot.slane %v786, 3
          %vm802 = vcmask 1045509
          %v803 = vsel %vm802, %v801, %v800
          %v804 = vrot.slane %v787, 2
          %vm805 = vcmask 1046534
          %v806 = vsel %vm805, %v804, %v803
          %v807 = vrot.slane %v788, 1
          %vm808 = vcmask 1047559
          %v809 = vsel %vm808, %v807, %v806
          %v810 = vpack.c.b16 %v809, %v809
          %v815 = vunpack.c.l.b16 %v765
          %v816 = vunpack.c.l.b16 %v766
          %v817 = vunpack.c.l.b16 %v767
          %v818 = vunpack.c.l.b16 %v768
          %v819 = vpack.c.b16 %v816, %v815
          %v820 = vpack.c.b16 %v818, %v817
          %v824 = vsel %vm679, %v810, 0
          %826 = vmatprep.subr.bf16.mxu0 0
          %827 = vmatpush1.bf16.msra.mxu0 %v819
          %828 = vmatprep.subr.bf16.mxu0 0
          %829 = vmatpush1.bf16.msra.mxu0 %v820
          %830 = vmatprep.subr.bf16.mxu0 0
          %831 = vmatpush1.bf16.msra.mxu0 0
          %832 = vmatprep.subr.bf16.mxu0 0
          %833 = vmatpush1.bf16.msra.mxu0 0
          %834 = vmatprep.subr.bf16.mxu0 0
          %835 = vmatpush1.bf16.msra.mxu0 0
          %836 = vmatprep.subr.bf16.mxu0 0
          %837 = vmatpush1.bf16.msra.mxu0 0
          %838 = vmatprep.subr.bf16.mxu0 0
          %839 = vmatpush1.bf16.msra.mxu0 0
          %840 = vmatprep.subr.bf16.mxu0 0
          %841 = vmatpush1.bf16.msra.mxu0 0
          %842 = vmatprep.subr.bf16.mxu0 0
          %843 = vmatpush1.bf16.msra.mxu0 0
          %844 = vmatprep.subr.bf16.mxu0 0
          %845 = vmatpush1.bf16.msra.mxu0 0
          %846 = vmatprep.subr.bf16.mxu0 0
          %847 = vmatpush1.bf16.msra.mxu0 0
          %848 = vmatprep.subr.bf16.mxu0 0
          %849 = vmatpush1.bf16.msra.mxu0 0
          %850 = vmatprep.subr.bf16.mxu0 0
          %851 = vmatpush1.bf16.msra.mxu0 0
          %852 = vmatprep.subr.bf16.mxu0 0
          %853 = vmatpush1.bf16.msra.mxu0 0
          %854 = vmatprep.subr.bf16.mxu0 0
          %855 = vmatpush1.bf16.msra.mxu0 0
          %856 = vmatprep.subr.bf16.mxu0 0
          %857 = vmatpush1.bf16.msra.mxu0 0
          %858 = vmatprep.mubr.bf16.mxu0 0
          %859 = vmatmul.mubr.bf16.gmra.mrb[0].mxu0 %v824
          %v860 = vpop.f32.mrb[0].mxu0
          %v861 = vadd.f32 %v772, %v860
          %v862 = vpop.f32.mrb[0].mxu0
          %v863 = vpop.f32.mrb[0].mxu0
          %v864 = vpop.f32.mrb[0].mxu0
          %865 = vdwg.mxu0
          %v866 = vlaneseq
          %v867 = vand.u32 %v866, 127
          %868 = vset.pattern.permute.xlu0 0
          %869 = vperm.xlu0 %868, %v653
          %v870 = vpop.permute.xlu0 %869
          %vm871 = vcmp.lt.s32.totalorder %v867, %v870
          %v872 = vsel %vm871, 0.0, -1e+09
          %v874 = vcombine.high %v861, %v861
          %v876 = vunpack.c.l.s4 1966171168
          %v877 = vunpack.c.0.s8 %v876
          %v878 = vlaneseq
          %v879 = vshrl.u32 %v878, 7
          %v880 = vsub.s32 %v877, %v879
          %v881 = vrot.slane %v861, %v880
          %v883 = vunpack.c.l.s4 1966171168
          %v884 = vunpack.c.0.s8 %v883
          %v885 = vlaneseq
          %v886 = vshrl.u32 %v885, 7
          %v887 = vsub.s32 %v884, %v886
          %v888 = vrot.slane %v874, %v887
          %v889 = vcombine.high %v881, %v881
          %v890 = vcombine.high %v888, %v888
          %v892 = vunpack.c.l.s4 1966171168
          %v893 = vunpack.c.0.s8 %v892
          %v894 = vlaneseq
          %v895 = vshrl.u32 %v894, 7
          %v896 = vsub.s32 %v893, %v895
          %v897 = vrot.slane %v881, %v896
          %v899 = vunpack.c.l.s4 1966171168
          %v900 = vunpack.c.0.s8 %v899
          %v901 = vlaneseq
          %v902 = vshrl.u32 %v901, 7
          %v903 = vsub.s32 %v900, %v902
          %v904 = vrot.slane %v888, %v903
          %v906 = vunpack.c.l.s4 1966171168
          %v907 = vunpack.c.0.s8 %v906
          %v908 = vlaneseq
          %v909 = vshrl.u32 %v908, 7
          %v910 = vsub.s32 %v907, %v909
          %v911 = vrot.slane %v889, %v910
          %v913 = vunpack.c.l.s4 1966171168
          %v914 = vunpack.c.0.s8 %v913
          %v915 = vlaneseq
          %v916 = vshrl.u32 %v915, 7
          %v917 = vsub.s32 %v914, %v916
          %v918 = vrot.slane %v890, %v917
          %v919 = vcombine.high %v897, %v897
          %v920 = vcombine.high %v904, %v904
          %v921 = vcombine.high %v911, %v911
          %v922 = vcombine.high %v918, %v918
          %v923 = vlaneseq
          %v924 = vshrl.u32 %v923, 7
          %v925 = vsub.s32 0, %v924
          %v926 = vrot.slane %v897, %v925
          %v927 = vlaneseq
          %v928 = vshrl.u32 %v927, 7
          %v929 = vsub.s32 0, %v928
          %v930 = vrot.slane %v911, %v929
          %v931 = vlaneseq
          %v932 = vshrl.u32 %v931, 7
          %v933 = vsub.s32 0, %v932
          %v934 = vrot.slane %v919, %v933
          %v935 = vlaneseq
          %v936 = vshrl.u32 %v935, 7
          %v937 = vsub.s32 0, %v936
          %v938 = vrot.slane %v921, %v937
          %v939 = vlaneseq
          %v940 = vshrl.u32 %v939, 7
          %v941 = vsub.s32 0, %v940
          %v942 = vrot.slane %v904, %v941
          %v943 = vlaneseq
          %v944 = vshrl.u32 %v943, 7
          %v945 = vsub.s32 0, %v944
          %v946 = vrot.slane %v918, %v945
          %v947 = vlaneseq
          %v948 = vshrl.u32 %v947, 7
          %v949 = vsub.s32 0, %v948
          %v950 = vrot.slane %v920, %v949
          %v951 = vlaneseq
          %v952 = vshrl.u32 %v951, 7
          %v953 = vsub.s32 0, %v952
          %v954 = vrot.slane %v922, %v953
          %v963 = vmul.f32 %v926, %v727
          %v964 = vmul.f32 %v930, %v730
          %v965 = vmul.f32 %v934, %v735
          %v966 = vmul.f32 %v938, %v738
          %v967 = vmul.f32 %v942, %v743
          %v968 = vmul.f32 %v946, %v746
          %v969 = vmul.f32 %v950, %v751
          %v970 = vmul.f32 %v954, %v754
          %vm971 = vcmask 523264
          %v972 = vsel %vm971, %v963, 0.0
          %973 = vadd.xlane.f32.xlu0 %v972
          %v974 = vpop.xlane.xlu0 %973
          %v975 = vsel %vm971, %v964, 0.0
          %976 = vadd.xlane.f32.xlu0 %v975
          %v977 = vpop.xlane.xlu0 %976
          %v978 = vsel %vm971, %v965, 0.0
          %979 = vadd.xlane.f32.xlu0 %v978
          %v980 = vpop.xlane.xlu0 %979
          %v981 = vsel %vm971, %v966, 0.0
          %982 = vadd.xlane.f32.xlu0 %v981
          %v983 = vpop.xlane.xlu0 %982
          %v984 = vsel %vm971, %v967, 0.0
          %985 = vadd.xlane.f32.xlu0 %v984
          %v986 = vpop.xlane.xlu0 %985
          %v987 = vsel %vm971, %v968, 0.0
          %988 = vadd.xlane.f32.xlu0 %v987
          %v989 = vpop.xlane.xlu0 %988
          %v990 = vsel %vm971, %v969, 0.0
          %991 = vadd.xlane.f32.xlu0 %v990
          %v992 = vpop.xlane.xlu0 %991
          %v993 = vsel %vm971, %v970, 0.0
          %994 = vadd.xlane.f32.xlu0 %v993
          %v995 = vpop.xlane.xlu0 %994
          %v997 = vlaneseq
          %v998 = vshrl.u32 %v997, 7
          %v999 = vsub.s32 0, %v998
          %v1000 = vrot.slane %v872, %v999
          %1002 = vbcast.lane.b32.xlu0 %v1000, 256
          %v1003 = vpop.permute.xlu0 %1002
          %v1004 = vlaneseq
          %v1005 = vshrl.u32 %v1004, 7
          %v1006 = vsub.s32 1, %v1005
          %v1007 = vrot.slane %v872, %v1006
          %1009 = vbcast.lane.b32.xlu0 %v1007, 256
          %v1010 = vpop.permute.xlu0 %1009
          %v1011 = vlaneseq
          %v1012 = vshrl.u32 %v1011, 7
          %v1013 = vsub.s32 2, %v1012
          %v1014 = vrot.slane %v872, %v1013
          %1016 = vbcast.lane.b32.xlu0 %v1014, 256
          %v1017 = vpop.permute.xlu0 %1016
          %v1018 = vlaneseq
          %v1019 = vshrl.u32 %v1018, 7
          %v1020 = vsub.s32 3, %v1019
          %v1021 = vrot.slane %v872, %v1020
          %1023 = vbcast.lane.b32.xlu0 %v1021, 256
          %v1024 = vpop.permute.xlu0 %1023
          %v1025 = vlaneseq
          %v1026 = vshrl.u32 %v1025, 7
          %v1027 = vsub.s32 4, %v1026
          %v1028 = vrot.slane %v872, %v1027
          %1030 = vbcast.lane.b32.xlu0 %v1028, 256
          %v1031 = vpop.permute.xlu0 %1030
          %v1032 = vlaneseq
          %v1033 = vshrl.u32 %v1032, 7
          %v1034 = vsub.s32 5, %v1033
          %v1035 = vrot.slane %v872, %v1034
          %1037 = vbcast.lane.b32.xlu0 %v1035, 256
          %v1038 = vpop.permute.xlu0 %1037
          %v1039 = vlaneseq
          %v1040 = vshrl.u32 %v1039, 7
          %v1041 = vsub.s32 6, %v1040
          %v1042 = vrot.slane %v872, %v1041
          %1044 = vbcast.lane.b32.xlu0 %v1042, 256
          %v1045 = vpop.permute.xlu0 %1044
          %v1046 = vlaneseq
          %v1047 = vshrl.u32 %v1046, 7
          %v1048 = vsub.s32 7, %v1047
          %v1049 = vrot.slane %v872, %v1048
          %1051 = vbcast.lane.b32.xlu0 %v1049, 256
          %v1052 = vpop.permute.xlu0 %1051
          %v1061 = vadd.f32 %v974, %v1003
          %v1062 = vadd.f32 %v977, %v1010
          %v1063 = vadd.f32 %v980, %v1017
          %v1064 = vadd.f32 %v983, %v1024
          %v1065 = vadd.f32 %v986, %v1031
          %v1066 = vadd.f32 %v989, %v1038
          %v1067 = vadd.f32 %v992, %v1045
          %v1068 = vadd.f32 %v995, %v1052
          %1077 = vset.pattern.permute.xlu0 0
          %1078 = vperm.xlu0 %1077, %v1061
          %v1079 = vpop.permute.xlu0 %1078
          %1080 = vset.pattern.permute.xlu0 0
          %1081 = vperm.xlu0 %1080, %v1062
          %v1082 = vpop.permute.xlu0 %1081
          %1083 = vset.pattern.permute.xlu0 0
          %1084 = vperm.xlu0 %1083, %v1063
          %v1085 = vpop.permute.xlu0 %1084
          %1086 = vset.pattern.permute.xlu0 0
          %1087 = vperm.xlu0 %1086, %v1064
          %v1088 = vpop.permute.xlu0 %1087
          %1089 = vset.pattern.permute.xlu0 0
          %1090 = vperm.xlu0 %1089, %v1065
          %v1091 = vpop.permute.xlu0 %1090
          %1092 = vset.pattern.permute.xlu0 0
          %1093 = vperm.xlu0 %1092, %v1066
          %v1094 = vpop.permute.xlu0 %1093
          %1095 = vset.pattern.permute.xlu0 0
          %1096 = vperm.xlu0 %1095, %v1067
          %v1097 = vpop.permute.xlu0 %1096
          %1098 = vset.pattern.permute.xlu0 0
          %1099 = vperm.xlu0 %1098, %v1068
          %v1100 = vpop.permute.xlu0 %1099
          %v1101 = vlaneseq
          %v1102 = vshrl.u32 %v1101, 7
          %v1103 = vsub.s32 %v867, %v1102
          %v1104 = vrot.slane %v1079, %v1103
          %v1105 = vlaneseq
          %v1106 = vshrl.u32 %v1105, 7
          %v1107 = vsub.s32 %v867, %v1106
          %v1108 = vrot.slane %v1082, %v1107
          %v1109 = vlaneseq
          %v1110 = vshrl.u32 %v1109, 7
          %v1111 = vsub.s32 %v867, %v1110
          %v1112 = vrot.slane %v1085, %v1111
          %v1113 = vlaneseq
          %v1114 = vshrl.u32 %v1113, 7
          %v1115 = vsub.s32 %v867, %v1114
          %v1116 = vrot.slane %v1088, %v1115
          %v1117 = vlaneseq
          %v1118 = vshrl.u32 %v1117, 7
          %v1119 = vsub.s32 %v867, %v1118
          %v1120 = vrot.slane %v1091, %v1119
          %v1121 = vlaneseq
          %v1122 = vshrl.u32 %v1121, 7
          %v1123 = vsub.s32 %v867, %v1122
          %v1124 = vrot.slane %v1094, %v1123
          %v1125 = vlaneseq
          %v1126 = vshrl.u32 %v1125, 7
          %v1127 = vsub.s32 %v867, %v1126
          %v1128 = vrot.slane %v1097, %v1127
          %v1129 = vlaneseq
          %v1130 = vshrl.u32 %v1129, 7
          %v1131 = vsub.s32 %v867, %v1130
          %v1132 = vrot.slane %v1100, %v1131
          %v1133 = vsel %vm790, %v1108, %v1104
          %v1134 = vsel %vm793, %v1112, %v1133
          %v1135 = vsel %vm796, %v1116, %v1134
          %v1136 = vsel %vm799, %v1120, %v1135
          %v1137 = vsel %vm802, %v1124, %v1136
          %v1138 = vsel %vm805, %v1128, %v1137
          %v1139 = vsel %vm808, %v1132, %v1138
          %vm1141 = vcmask 64512
          %v1142 = vsel %vm1141, %v1139, -inf
          %1143 = vmax.xlane.f32.xlu0 %v1142
          %v1144 = vpop.xlane.xlu0 %1143
          %v1146 = vlaneseq
          %v1147 = vshrl.u32 %v1146, 7
          %v1148 = vsub.s32 0, %v1147
          %v1149 = vrot.slane %v1144, %v1148
          %v1150 = vlaneseq
          %v1151 = vshrl.u32 %v1150, 7
          %v1152 = vsub.s32 1, %v1151
          %v1153 = vrot.slane %v1144, %v1152
          %v1154 = vlaneseq
          %v1155 = vshrl.u32 %v1154, 7
          %v1156 = vsub.s32 2, %v1155
          %v1157 = vrot.slane %v1144, %v1156
          %v1158 = vlaneseq
          %v1159 = vshrl.u32 %v1158, 7
          %v1160 = vsub.s32 3, %v1159
          %v1161 = vrot.slane %v1144, %v1160
          %v1162 = vlaneseq
          %v1163 = vshrl.u32 %v1162, 7
          %v1164 = vsub.s32 4, %v1163
          %v1165 = vrot.slane %v1144, %v1164
          %v1166 = vlaneseq
          %v1167 = vshrl.u32 %v1166, 7
          %v1168 = vsub.s32 5, %v1167
          %v1169 = vrot.slane %v1144, %v1168
          %v1170 = vlaneseq
          %v1171 = vshrl.u32 %v1170, 7
          %v1172 = vsub.s32 6, %v1171
          %v1173 = vrot.slane %v1144, %v1172
          %v1174 = vlaneseq
          %v1175 = vshrl.u32 %v1174, 7
          %v1176 = vsub.s32 7, %v1175
          %v1177 = vrot.slane %v1144, %v1176
          %v1186 = vsub.f32 %v1061, %v1149
          %v1187 = vsub.f32 %v1062, %v1153
          %v1188 = vsub.f32 %v1063, %v1157
          %v1189 = vsub.f32 %v1064, %v1161
          %v1190 = vsub.f32 %v1065, %v1165
          %v1191 = vsub.f32 %v1066, %v1169
          %v1192 = vsub.f32 %v1067, %v1173
          %v1193 = vsub.f32 %v1068, %v1177
          %v1194 = vmul.f32 %v1186, 1.442695
          %v1195 = vpow.pop %v1194
          %v1196 = vmul.f32 %v1187, 1.442695
          %v1197 = vpow.pop %v1196
          %v1198 = vmul.f32 %v1188, 1.442695
          %v1199 = vpow.pop %v1198
          %v1200 = vmul.f32 %v1189, 1.442695
          %v1201 = vpow.pop %v1200
          %v1202 = vmul.f32 %v1190, 1.442695
          %v1203 = vpow.pop %v1202
          %v1204 = vmul.f32 %v1191, 1.442695
          %v1205 = vpow.pop %v1204
          %v1206 = vmul.f32 %v1192, 1.442695
          %v1207 = vpow.pop %v1206
          %v1208 = vmul.f32 %v1193, 1.442695
          %v1209 = vpow.pop %v1208
          %1218 = vset.pattern.permute.xlu0 0
          %1219 = vperm.xlu0 %1218, %v1195
          %v1220 = vpop.permute.xlu0 %1219
          %1221 = vset.pattern.permute.xlu0 0
          %1222 = vperm.xlu0 %1221, %v1197
          %v1223 = vpop.permute.xlu0 %1222
          %1224 = vset.pattern.permute.xlu0 0
          %1225 = vperm.xlu0 %1224, %v1199
          %v1226 = vpop.permute.xlu0 %1225
          %1227 = vset.pattern.permute.xlu0 0
          %1228 = vperm.xlu0 %1227, %v1201
          %v1229 = vpop.permute.xlu0 %1228
          %1230 = vset.pattern.permute.xlu0 0
          %1231 = vperm.xlu0 %1230, %v1203
          %v1232 = vpop.permute.xlu0 %1231
          %1233 = vset.pattern.permute.xlu0 0
          %1234 = vperm.xlu0 %1233, %v1205
          %v1235 = vpop.permute.xlu0 %1234
          %1236 = vset.pattern.permute.xlu0 0
          %1237 = vperm.xlu0 %1236, %v1207
          %v1238 = vpop.permute.xlu0 %1237
          %1239 = vset.pattern.permute.xlu0 0
          %1240 = vperm.xlu0 %1239, %v1209
          %v1241 = vpop.permute.xlu0 %1240
          %v1242 = vlaneseq
          %v1243 = vshrl.u32 %v1242, 7
          %v1244 = vsub.s32 %v867, %v1243
          %v1245 = vrot.slane %v1220, %v1244
          %v1246 = vlaneseq
          %v1247 = vshrl.u32 %v1246, 7
          %v1248 = vsub.s32 %v867, %v1247
          %v1249 = vrot.slane %v1223, %v1248
          %v1250 = vlaneseq
          %v1251 = vshrl.u32 %v1250, 7
          %v1252 = vsub.s32 %v867, %v1251
          %v1253 = vrot.slane %v1226, %v1252
          %v1254 = vlaneseq
          %v1255 = vshrl.u32 %v1254, 7
          %v1256 = vsub.s32 %v867, %v1255
          %v1257 = vrot.slane %v1229, %v1256
          %v1258 = vlaneseq
          %v1259 = vshrl.u32 %v1258, 7
          %v1260 = vsub.s32 %v867, %v1259
          %v1261 = vrot.slane %v1232, %v1260
          %v1262 = vlaneseq
          %v1263 = vshrl.u32 %v1262, 7
          %v1264 = vsub.s32 %v867, %v1263
          %v1265 = vrot.slane %v1235, %v1264
          %v1266 = vlaneseq
          %v1267 = vshrl.u32 %v1266, 7
          %v1268 = vsub.s32 %v867, %v1267
          %v1269 = vrot.slane %v1238, %v1268
          %v1270 = vlaneseq
          %v1271 = vshrl.u32 %v1270, 7
          %v1272 = vsub.s32 %v867, %v1271
          %v1273 = vrot.slane %v1241, %v1272
          %v1274 = vsel %vm790, %v1249, %v1245
          %v1275 = vsel %vm793, %v1253, %v1274
          %v1276 = vsel %vm796, %v1257, %v1275
          %v1277 = vsel %vm799, %v1261, %v1276
          %v1278 = vsel %vm802, %v1265, %v1277
          %v1279 = vsel %vm805, %v1269, %v1278
          %v1280 = vsel %vm808, %v1273, %v1279
          %v1282 = vsel %vm1141, %v1280, 0.0
          %1283 = vadd.xlane.f32.xlu0 %v1282
          %v1284 = vpop.xlane.xlu0 %1283
          %v1285 = vrcp.pop %v1284
          %v1287 = vlaneseq
          %v1288 = vshrl.u32 %v1287, 7
          %v1289 = vsub.s32 0, %v1288
          %v1290 = vrot.slane %v1285, %v1289
          %v1291 = vlaneseq
          %v1292 = vshrl.u32 %v1291, 7
          %v1293 = vsub.s32 1, %v1292
          %v1294 = vrot.slane %v1285, %v1293
          %v1295 = vlaneseq
          %v1296 = vshrl.u32 %v1295, 7
          %v1297 = vsub.s32 2, %v1296
          %v1298 = vrot.slane %v1285, %v1297
          %v1299 = vlaneseq
          %v1300 = vshrl.u32 %v1299, 7
          %v1301 = vsub.s32 3, %v1300
          %v1302 = vrot.slane %v1285, %v1301
          %v1303 = vlaneseq
          %v1304 = vshrl.u32 %v1303, 7
          %v1305 = vsub.s32 4, %v1304
          %v1306 = vrot.slane %v1285, %v1305
          %v1307 = vlaneseq
          %v1308 = vshrl.u32 %v1307, 7
          %v1309 = vsub.s32 5, %v1308
          %v1310 = vrot.slane %v1285, %v1309
          %v1311 = vlaneseq
          %v1312 = vshrl.u32 %v1311, 7
          %v1313 = vsub.s32 6, %v1312
          %v1314 = vrot.slane %v1285, %v1313
          %v1315 = vlaneseq
          %v1316 = vshrl.u32 %v1315, 7
          %v1317 = vsub.s32 7, %v1316
          %v1318 = vrot.slane %v1285, %v1317
          %v1327 = vmul.f32 %v1195, %v1290
          %v1328 = vmul.f32 %v1197, %v1294
          %v1329 = vmul.f32 %v1199, %v1298
          %v1330 = vmul.f32 %v1201, %v1302
          %v1331 = vmul.f32 %v1203, %v1306
          %v1332 = vmul.f32 %v1205, %v1310
          %v1333 = vmul.f32 %v1207, %v1314
          %v1334 = vmul.f32 %v1209, %v1318
          %1336 = vset.pattern.permute.xlu0 0
          %1337 = vperm.xlu0 %1336, %v1327
          %v1338 = vpop.permute.xlu0 %1337
          %1341 = vset.pattern.permute.xlu0 0
          %1342 = vperm.xlu0 %1341, %v1328
          %v1343 = vpop.permute.xlu0 %1342
          %1346 = vset.pattern.permute.xlu0 0
          %1347 = vperm.xlu0 %1346, %v1329
          %v1348 = vpop.permute.xlu0 %1347
          %1351 = vset.pattern.permute.xlu0 0
          %1352 = vperm.xlu0 %1351, %v1330
          %v1353 = vpop.permute.xlu0 %1352
          %1356 = vset.pattern.permute.xlu0 0
          %1357 = vperm.xlu0 %1356, %v1331
          %v1358 = vpop.permute.xlu0 %1357
          %1361 = vset.pattern.permute.xlu0 0
          %1362 = vperm.xlu0 %1361, %v1332
          %v1363 = vpop.permute.xlu0 %1362
          %1366 = vset.pattern.permute.xlu0 0
          %1367 = vperm.xlu0 %1366, %v1333
          %v1368 = vpop.permute.xlu0 %1367
          %1371 = vset.pattern.permute.xlu0 0
          %1372 = vperm.xlu0 %1371, %v1334
          %v1373 = vpop.permute.xlu0 %1372
          %v1375 = vmul.f32 %v1338, %v727
          %v1376 = vmul.f32 %v1343, %v730
          %v1377 = vmul.f32 %v1348, %v735
          %v1378 = vmul.f32 %v1353, %v738
          %v1379 = vmul.f32 %v1358, %v743
          %v1380 = vmul.f32 %v1363, %v746
          %v1381 = vmul.f32 %v1368, %v751
          %v1382 = vmul.f32 %v1373, %v754
          %v1383 = vsel %vm971, %v1375, 0.0
          %v1384 = vrot.slane %v1383, 4
          %v1385 = vadd.f32 %v1383, %v1384
          %v1386 = vrot.slane %v1385, 2
          %v1387 = vadd.f32 %v1385, %v1386
          %v1388 = vrot.slane %v1387, 1
          %v1389 = vadd.f32 %v1387, %v1388
          %v1390 = vsel %vm971, %v1376, 0.0
          %v1391 = vrot.slane %v1390, 4
          %v1392 = vadd.f32 %v1390, %v1391
          %v1393 = vrot.slane %v1392, 2
          %v1394 = vadd.f32 %v1392, %v1393
          %v1395 = vrot.slane %v1394, 1
          %v1396 = vadd.f32 %v1394, %v1395
          %v1397 = vsel %vm971, %v1377, 0.0
          %v1398 = vrot.slane %v1397, 4
          %v1399 = vadd.f32 %v1397, %v1398
          %v1400 = vrot.slane %v1399, 2
          %v1401 = vadd.f32 %v1399, %v1400
          %v1402 = vrot.slane %v1401, 1
          %v1403 = vadd.f32 %v1401, %v1402
          %v1404 = vsel %vm971, %v1378, 0.0
          %v1405 = vrot.slane %v1404, 4
          %v1406 = vadd.f32 %v1404, %v1405
          %v1407 = vrot.slane %v1406, 2
          %v1408 = vadd.f32 %v1406, %v1407
          %v1409 = vrot.slane %v1408, 1
          %v1410 = vadd.f32 %v1408, %v1409
          %v1411 = vsel %vm971, %v1379, 0.0
          %v1412 = vrot.slane %v1411, 4
          %v1413 = vadd.f32 %v1411, %v1412
          %v1414 = vrot.slane %v1413, 2
          %v1415 = vadd.f32 %v1413, %v1414
          %v1416 = vrot.slane %v1415, 1
          %v1417 = vadd.f32 %v1415, %v1416
          %v1418 = vsel %vm971, %v1380, 0.0
          %v1419 = vrot.slane %v1418, 4
          %v1420 = vadd.f32 %v1418, %v1419
          %v1421 = vrot.slane %v1420, 2
          %v1422 = vadd.f32 %v1420, %v1421
          %v1423 = vrot.slane %v1422, 1
          %v1424 = vadd.f32 %v1422, %v1423
          %v1425 = vsel %vm971, %v1381, 0.0
          %v1426 = vrot.slane %v1425, 4
          %v1427 = vadd.f32 %v1425, %v1426
          %v1428 = vrot.slane %v1427, 2
          %v1429 = vadd.f32 %v1427, %v1428
          %v1430 = vrot.slane %v1429, 1
          %v1431 = vadd.f32 %v1429, %v1430
          %v1432 = vsel %vm971, %v1382, 0.0
          %v1433 = vrot.slane %v1432, 4
          %v1434 = vadd.f32 %v1432, %v1433
          %v1435 = vrot.slane %v1434, 2
          %v1436 = vadd.f32 %v1434, %v1435
          %v1437 = vrot.slane %v1436, 1
          %v1438 = vadd.f32 %v1436, %v1437
          %v1439 = vpack.c.bf16 %v1389, %v1389
          %v1440 = vpack.c.bf16 %v1396, %v1396
          %v1441 = vpack.c.bf16 %v1403, %v1403
          %v1442 = vpack.c.bf16 %v1410, %v1410
          %v1443 = vpack.c.bf16 %v1417, %v1417
          %v1444 = vpack.c.bf16 %v1424, %v1424
          %v1445 = vpack.c.bf16 %v1431, %v1431
          %v1446 = vpack.c.bf16 %v1438, %v1438
          %v1447 = vld [vmem:[%s619] sm:$0xf]
          %v1448 = vld [vmem:[%s619 + $0x4] sm:$0xf]
          %v1449 = vld [vmem:[%s619 + $0x8] sm:$0xf]
          %v1450 = vld [vmem:[%s619 + $0xc] sm:$0xf]
          %v1451 = vld [vmem:[%s619 + $0x10] sm:$0xf]
          %v1452 = vld [vmem:[%s619 + $0x14] sm:$0xf]
          %v1453 = vld [vmem:[%s619 + $0x18] sm:$0xf]
          %v1454 = vld [vmem:[%s619 + $0x1c] sm:$0xf]
          %v1463 = vunpack.c.l.b16 %v1439
          %v1464 = vunpack.c.l.b16 %v1440
          %v1465 = vunpack.c.l.b16 %v1441
          %v1466 = vunpack.c.l.b16 %v1442
          %v1467 = vunpack.c.l.b16 %v1443
          %v1468 = vunpack.c.l.b16 %v1444
          %v1469 = vunpack.c.l.b16 %v1445
          %v1470 = vunpack.c.l.b16 %v1446
          %v1471 = vsel %vm790, %v1464, %v1463
          %v1472 = vsel %vm793, %v1465, %v1471
          %v1473 = vsel %vm796, %v1466, %v1472
          %v1474 = vsel %vm799, %v1467, %v1473
          %v1475 = vsel %vm802, %v1468, %v1474
          %v1476 = vsel %vm805, %v1469, %v1475
          %v1477 = vsel %vm808, %v1470, %v1476
          %v1478 = vpack.c.b16 %v1477, %v1477
          %v1487 = vunpack.c.l.b16 %v1447
          %v1488 = vunpack.c.l.b16 %v1448
          %v1489 = vunpack.c.l.b16 %v1449
          %v1490 = vunpack.c.l.b16 %v1450
          %v1491 = vunpack.c.l.b16 %v1451
          %v1492 = vunpack.c.l.b16 %v1452
          %v1493 = vunpack.c.l.b16 %v1453
          %v1494 = vunpack.c.l.b16 %v1454
          %v1495 = vpack.c.b16 %v1488, %v1487
          %v1496 = vpack.c.b16 %v1490, %v1489
          %v1497 = vpack.c.b16 %v1492, %v1491
          %v1498 = vpack.c.b16 %v1494, %v1493
          %v1504 = vsel %vm971, %v1478, 0
          %1506 = vmatprep.subr.bf16.mxu0 0
          %1507 = vmatpush1.bf16.msra.mxu0 %v1495
          %1508 = vmatprep.subr.bf16.mxu0 0
          %1509 = vmatpush1.bf16.msra.mxu0 %v1496
          %1510 = vmatprep.subr.bf16.mxu0 0
          %1511 = vmatpush1.bf16.msra.mxu0 %v1497
          %1512 = vmatprep.subr.bf16.mxu0 0
          %1513 = vmatpush1.bf16.msra.mxu0 %v1498
          %1514 = vmatprep.subr.bf16.mxu0 0
          %1515 = vmatpush1.bf16.msra.mxu0 0
          %1516 = vmatprep.subr.bf16.mxu0 0
          %1517 = vmatpush1.bf16.msra.mxu0 0
          %1518 = vmatprep.subr.bf16.mxu0 0
          %1519 = vmatpush1.bf16.msra.mxu0 0
          %1520 = vmatprep.subr.bf16.mxu0 0
          %1521 = vmatpush1.bf16.msra.mxu0 0
          %1522 = vmatprep.subr.bf16.mxu0 0
          %1523 = vmatpush1.bf16.msra.mxu0 0
          %1524 = vmatprep.subr.bf16.mxu0 0
          %1525 = vmatpush1.bf16.msra.mxu0 0
          %1526 = vmatprep.subr.bf16.mxu0 0
          %1527 = vmatpush1.bf16.msra.mxu0 0
          %1528 = vmatprep.subr.bf16.mxu0 0
          %1529 = vmatpush1.bf16.msra.mxu0 0
          %1530 = vmatprep.subr.bf16.mxu0 0
          %1531 = vmatpush1.bf16.msra.mxu0 0
          %1532 = vmatprep.subr.bf16.mxu0 0
          %1533 = vmatpush1.bf16.msra.mxu0 0
          %1534 = vmatprep.subr.bf16.mxu0 0
          %1535 = vmatpush1.bf16.msra.mxu0 0
          %1536 = vmatprep.subr.bf16.mxu0 0
          %1537 = vmatpush1.bf16.msra.mxu0 0
          %1538 = vmatprep.mubr.bf16.mxu0 0
          %1539 = vmatmul.mubr.bf16.gmra.mrb[0].mxu0 %v1504
          %v1540 = vpop.f32.mrb[0].mxu0
          %v1541 = vadd.f32 0.0, %v1540
          %v1542 = vpop.f32.mrb[0].mxu0
          %v1543 = vpop.f32.mrb[0].mxu0
          %v1544 = vpop.f32.mrb[0].mxu0
          %1545 = vdwg.mxu0
          %v1547 = vrot.slane %v1541, 1
          %v1548 = vrot.slane %v1541, 2
          %v1549 = vrot.slane %v1541, 3
          %v1550 = vrot.slane %v1541, 4
          %v1551 = vrot.slane %v1541, 5
          %v1552 = vrot.slane %v1541, 6
          %v1553 = vrot.slane %v1541, 7
          %v1562 = vadd.f32 %v727, %v1541
          %v1563 = vadd.f32 %v730, %v1547
          %v1564 = vadd.f32 %v735, %v1548
          %v1565 = vadd.f32 %v738, %v1549
          %v1566 = vadd.f32 %v743, %v1550
          %v1567 = vadd.f32 %v746, %v1551
          %v1568 = vadd.f32 %v751, %v1552
          %v1569 = vadd.f32 %v754, %v1553
          %v1570 = vlaneseq
          %v1571 = vshrl.u32 %v1570, 7
          %v1572 = vsub.s32 2, %v1571
          %v1573 = vrot.slane %v654, %v1572
          %v1574 = vadd.f32 %v1562, %v1573
          %v1575 = vadd.f32 %v1563, %v1573
          %v1576 = vadd.f32 %v1564, %v1573
          %v1577 = vadd.f32 %v1565, %v1573
          %v1578 = vadd.f32 %v1566, %v1573
          %v1579 = vadd.f32 %v1567, %v1573
          %v1580 = vadd.f32 %v1568, %v1573
          %v1581 = vadd.f32 %v1569, %v1573
          %v1582 = vpack.c.bf16 %v1574, %v1574
          %v1583 = vpack.c.bf16 %v1575, %v1575
          %v1584 = vpack.c.bf16 %v1576, %v1576
          %v1585 = vpack.c.bf16 %v1577, %v1577
          %v1586 = vpack.c.bf16 %v1578, %v1578
          %v1587 = vpack.c.bf16 %v1579, %v1579
          %v1588 = vpack.c.bf16 %v1580, %v1580
          %v1589 = vpack.c.bf16 %v1581, %v1581
          %v1590 = vld [vmem:[%s509] sm:$0xf]
          %v1591 = vld [vmem:[%s509 + $0x4] sm:$0xf]
          %v1592 = vld [vmem:[%s509 + $0x8] sm:$0xf]
          %v1593 = vld [vmem:[%s509 + $0xc] sm:$0xf]
          %v1594 = vld [vmem:[%s509 + $0x10] sm:$0xf]
          %v1595 = vld [vmem:[%s509 + $0x14] sm:$0xf]
          %v1596 = vld [vmem:[%s509 + $0x18] sm:$0xf]
          %v1597 = vld [vmem:[%s509 + $0x1c] sm:$0xf]
          %v1598 = vlaneseq
          %v1599 = vshrl.u32 %v1598, 7
          %v1600 = vsub.s32 3, %v1599
          %v1601 = vrot.slane %v654, %v1600
          %v1610 = vunpack.c.l.b16 %v1582
          %v1611 = vunpack.c.l.b16 %v1583
          %v1612 = vunpack.c.l.b16 %v1584
          %v1613 = vunpack.c.l.b16 %v1585
          %v1614 = vunpack.c.l.b16 %v1586
          %v1615 = vunpack.c.l.b16 %v1587
          %v1616 = vunpack.c.l.b16 %v1588
          %v1617 = vunpack.c.l.b16 %v1589
          %v1618 = vrot.slane %v1611, 7
          %v1619 = vsel %vm790, %v1618, %v1610
          %v1620 = vrot.slane %v1612, 6
          %v1621 = vsel %vm793, %v1620, %v1619
          %v1622 = vrot.slane %v1613, 5
          %v1623 = vsel %vm796, %v1622, %v1621
          %v1624 = vrot.slane %v1614, 4
          %v1625 = vsel %vm799, %v1624, %v1623
          %v1626 = vrot.slane %v1615, 3
          %v1627 = vsel %vm802, %v1626, %v1625
          %v1628 = vrot.slane %v1616, 2
          %v1629 = vsel %vm805, %v1628, %v1627
          %v1630 = vrot.slane %v1617, 1
          %v1631 = vsel %vm808, %v1630, %v1629
          %v1632 = vpack.c.b16 %v1631, %v1631
          %v1641 = vunpack.c.l.b16 %v1590
          %v1642 = vunpack.c.l.b16 %v1591
          %v1643 = vunpack.c.l.b16 %v1592
          %v1644 = vunpack.c.l.b16 %v1593
          %v1645 = vunpack.c.l.b16 %v1594
          %v1646 = vunpack.c.l.b16 %v1595
          %v1647 = vunpack.c.l.b16 %v1596
          %v1648 = vunpack.c.l.b16 %v1597
          %v1649 = vpack.c.b16 %v1642, %v1641
          %v1650 = vpack.c.b16 %v1644, %v1643
          %v1651 = vpack.c.b16 %v1646, %v1645
          %v1652 = vpack.c.b16 %v1648, %v1647
          %v1658 = vsel %vm971, %v1632, 0
          %1660 = vmatprep.subr.bf16.mxu0 0
          %1661 = vmatpush1.bf16.msra.mxu0 %v1649
          %1662 = vmatprep.subr.bf16.mxu0 0
          %1663 = vmatpush1.bf16.msra.mxu0 %v1650
          %1664 = vmatprep.subr.bf16.mxu0 0
          %1665 = vmatpush1.bf16.msra.mxu0 %v1651
          %1666 = vmatprep.subr.bf16.mxu0 0
          %1667 = vmatpush1.bf16.msra.mxu0 %v1652
          %1668 = vmatprep.subr.bf16.mxu0 0
          %1669 = vmatpush1.bf16.msra.mxu0 0
          %1670 = vmatprep.subr.bf16.mxu0 0
          %1671 = vmatpush1.bf16.msra.mxu0 0
          %1672 = vmatprep.subr.bf16.mxu0 0
          %1673 = vmatpush1.bf16.msra.mxu0 0
          %1674 = vmatprep.subr.bf16.mxu0 0
          %1675 = vmatpush1.bf16.msra.mxu0 0
          %1676 = vmatprep.subr.bf16.mxu0 0
          %1677 = vmatpush1.bf16.msra.mxu0 0
          %1678 = vmatprep.subr.bf16.mxu0 0
          %1679 = vmatpush1.bf16.msra.mxu0 0
          %1680 = vmatprep.subr.bf16.mxu0 0
          %1681 = vmatpush1.bf16.msra.mxu0 0
          %1682 = vmatprep.subr.bf16.mxu0 0
          %1683 = vmatpush1.bf16.msra.mxu0 0
          %1684 = vmatprep.subr.bf16.mxu0 0
          %1685 = vmatpush1.bf16.msra.mxu0 0
          %1686 = vmatprep.subr.bf16.mxu0 0
          %1687 = vmatpush1.bf16.msra.mxu0 0
          %1688 = vmatprep.subr.bf16.mxu0 0
          %1689 = vmatpush1.bf16.msra.mxu0 0
          %1690 = vmatprep.subr.bf16.mxu0 0
          %1691 = vmatpush1.bf16.msra.mxu0 0
          %1692 = vmatprep.mubr.bf16.mxu0 0
          %1693 = vmatmul.mubr.bf16.gmra.mrb[0].mxu0 %v1658
          %v1694 = vpop.f32.mrb[0].mxu0
          %v1695 = vadd.f32 %v1601, %v1694
          %v1696 = vpop.f32.mrb[0].mxu0
          %v1697 = vpop.f32.mrb[0].mxu0
          %v1698 = vpop.f32.mrb[0].mxu0
          %1699 = vdwg.mxu0
          %v1700 = vmax.f32 %v1695, 0.0
          %v1701 = vpack.c.bf16 %v1700, %v1700
          %v1702 = vld [vmem:[%s624] sm:$0xf]
          %v1703 = vld [vmem:[%s624 + $0x4] sm:$0xf]
          %v1704 = vld [vmem:[%s624 + $0x8] sm:$0xf]
          %v1705 = vld [vmem:[%s624 + $0xc] sm:$0xf]
          %v1706 = vld [vmem:[%s624 + $0x10] sm:$0xf]
          %v1707 = vld [vmem:[%s624 + $0x14] sm:$0xf]
          %v1708 = vld [vmem:[%s624 + $0x18] sm:$0xf]
          %v1709 = vld [vmem:[%s624 + $0x1c] sm:$0xf]
          %v1710 = vld [vmem:[%s624 + $0x20] sm:$0xf]
          %v1711 = vld [vmem:[%s624 + $0x24] sm:$0xf]
          %v1712 = vld [vmem:[%s624 + $0x28] sm:$0xf]
          %v1713 = vld [vmem:[%s624 + $0x2c] sm:$0xf]
          %v1714 = vld [vmem:[%s624 + $0x30] sm:$0xf]
          %v1715 = vld [vmem:[%s624 + $0x34] sm:$0xf]
          %v1716 = vld [vmem:[%s624 + $0x38] sm:$0xf]
          %v1717 = vld [vmem:[%s624 + $0x3c] sm:$0xf]
          %v1734 = vunpack.c.l.b16 %v1702
          %v1735 = vunpack.c.l.b16 %v1703
          %v1736 = vunpack.c.l.b16 %v1704
          %v1737 = vunpack.c.l.b16 %v1705
          %v1738 = vunpack.c.l.b16 %v1706
          %v1739 = vunpack.c.l.b16 %v1707
          %v1740 = vunpack.c.l.b16 %v1708
          %v1741 = vunpack.c.l.b16 %v1709
          %v1742 = vunpack.c.l.b16 %v1710
          %v1743 = vunpack.c.l.b16 %v1711
          %v1744 = vunpack.c.l.b16 %v1712
          %v1745 = vunpack.c.l.b16 %v1713
          %v1746 = vunpack.c.l.b16 %v1714
          %v1747 = vunpack.c.l.b16 %v1715
          %v1748 = vunpack.c.l.b16 %v1716
          %v1749 = vunpack.c.l.b16 %v1717
          %v1750 = vpack.c.b16 %v1735, %v1734
          %v1751 = vpack.c.b16 %v1737, %v1736
          %v1752 = vpack.c.b16 %v1739, %v1738
          %v1753 = vpack.c.b16 %v1741, %v1740
          %v1754 = vpack.c.b16 %v1743, %v1742
          %v1755 = vpack.c.b16 %v1745, %v1744
          %v1756 = vpack.c.b16 %v1747, %v1746
          %v1757 = vpack.c.b16 %v1749, %v1748
          %1766 = vmatprep.subr.bf16.mxu0 0
          %1767 = vmatpush1.bf16.msra.mxu0 %v1750
          %1768 = vmatprep.subr.bf16.mxu0 0
          %1769 = vmatpush1.bf16.msra.mxu0 %v1751
          %1770 = vmatprep.subr.bf16.mxu0 0
          %1771 = vmatpush1.bf16.msra.mxu0 %v1752
          %1772 = vmatprep.subr.bf16.mxu0 0
          %1773 = vmatpush1.bf16.msra.mxu0 %v1753
          %1774 = vmatprep.subr.bf16.mxu0 0
          %1775 = vmatpush1.bf16.msra.mxu0 %v1754
          %1776 = vmatprep.subr.bf16.mxu0 0
          %1777 = vmatpush1.bf16.msra.mxu0 %v1755
          %1778 = vmatprep.subr.bf16.mxu0 0
          %1779 = vmatpush1.bf16.msra.mxu0 %v1756
          %1780 = vmatprep.subr.bf16.mxu0 0
          %1781 = vmatpush1.bf16.msra.mxu0 %v1757
          %1782 = vmatprep.subr.bf16.mxu0 0
          %1783 = vmatpush1.bf16.msra.mxu0 0
          %1784 = vmatprep.subr.bf16.mxu0 0
          %1785 = vmatpush1.bf16.msra.mxu0 0
          %1786 = vmatprep.subr.bf16.mxu0 0
          %1787 = vmatpush1.bf16.msra.mxu0 0
          %1788 = vmatprep.subr.bf16.mxu0 0
          %1789 = vmatpush1.bf16.msra.mxu0 0
          %1790 = vmatprep.subr.bf16.mxu0 0
          %1791 = vmatpush1.bf16.msra.mxu0 0
          %1792 = vmatprep.subr.bf16.mxu0 0
          %1793 = vmatpush1.bf16.msra.mxu0 0
          %1794 = vmatprep.subr.bf16.mxu0 0
          %1795 = vmatpush1.bf16.msra.mxu0 0
          %1796 = vmatprep.subr.bf16.mxu0 0
          %1797 = vmatpush1.bf16.msra.mxu0 0
          %1798 = vmatprep.mubr.bf16.mxu0 0
          %1799 = vmatmul.mubr.bf16.gmra.mrb[0].mxu0 %v1701
          %v1800 = vpop.f32.mrb[0].mxu0
          %v1801 = vadd.f32 0.0, %v1800
          %v1802 = vpop.f32.mrb[0].mxu0
          %v1803 = vpop.f32.mrb[0].mxu0
          %v1804 = vpop.f32.mrb[0].mxu0
          %1805 = vdwg.mxu0
          %v1807 = vrot.slane %v1801, 1
          %v1808 = vrot.slane %v1801, 2
          %v1809 = vrot.slane %v1801, 3
          %v1810 = vrot.slane %v1801, 4
          %v1811 = vrot.slane %v1801, 5
          %v1812 = vrot.slane %v1801, 6
          %v1813 = vrot.slane %v1801, 7
          %v1822 = vadd.f32 %v1574, %v1801
          %v1823 = vadd.f32 %v1575, %v1807
          %v1824 = vadd.f32 %v1576, %v1808
          %v1825 = vadd.f32 %v1577, %v1809
          %v1826 = vadd.f32 %v1578, %v1810
          %v1827 = vadd.f32 %v1579, %v1811
          %v1828 = vadd.f32 %v1580, %v1812
          %v1829 = vadd.f32 %v1581, %v1813
          %v1830 = vlaneseq
          %v1831 = vshrl.u32 %v1830, 7
          %v1832 = vsub.s32 4, %v1831
          %v1833 = vrot.slane %v654, %v1832
          %v1834 = vadd.f32 %v1822, %v1833
          %v1835 = vadd.f32 %v1823, %v1833
          %v1836 = vadd.f32 %v1824, %v1833
          %v1837 = vadd.f32 %v1825, %v1833
          %v1838 = vadd.f32 %v1826, %v1833
          %v1839 = vadd.f32 %v1827, %v1833
          %v1840 = vadd.f32 %v1828, %v1833
          %v1841 = vadd.f32 %v1829, %v1833
          %v1842 = vpack.c.bf16 %v1834, %v1834
          %v1843 = vpack.c.bf16 %v1835, %v1835
          %v1844 = vpack.c.bf16 %v1836, %v1836
          %v1845 = vpack.c.bf16 %v1837, %v1837
          %v1846 = vpack.c.bf16 %v1838, %v1838
          %v1847 = vpack.c.bf16 %v1839, %v1839
          %v1848 = vpack.c.bf16 %v1840, %v1840
          %v1849 = vpack.c.bf16 %v1841, %v1841
          %v1850 = vld [vmem:[%s518] sm:$0xf]
          %v1851 = vld [vmem:[%s518 + $0x4] sm:$0xf]
          %v1852 = vld [vmem:[%s518 + $0x8] sm:$0xf]
          %v1853 = vld [vmem:[%s518 + $0xc] sm:$0xf]
          %v1854 = vld [vmem:[%s518 + $0x10] sm:$0xf]
          %v1855 = vld [vmem:[%s518 + $0x14] sm:$0xf]
          %v1856 = vld [vmem:[%s518 + $0x18] sm:$0xf]
          %v1857 = vld [vmem:[%s518 + $0x1c] sm:$0xf]
          %v1858 = vlaneseq
          %v1859 = vshrl.u32 %v1858, 7
          %v1860 = vsub.s32 5, %v1859
          %v1861 = vrot.slane %v654, %v1860
          %v1870 = vunpack.c.l.b16 %v1842
          %v1871 = vunpack.c.l.b16 %v1843
          %v1872 = vunpack.c.l.b16 %v1844
          %v1873 = vunpack.c.l.b16 %v1845
          %v1874 = vunpack.c.l.b16 %v1846
          %v1875 = vunpack.c.l.b16 %v1847
          %v1876 = vunpack.c.l.b16 %v1848
          %v1877 = vunpack.c.l.b16 %v1849
          %v1878 = vrot.slane %v1871, 7
          %v1879 = vsel %vm790, %v1878, %v1870
          %v1880 = vrot.slane %v1872, 6
          %v1881 = vsel %vm793, %v1880, %v1879
          %v1882 = vrot.slane %v1873, 5
          %v1883 = vsel %vm796, %v1882, %v1881
          %v1884 = vrot.slane %v1874, 4
          %v1885 = vsel %vm799, %v1884, %v1883
          %v1886 = vrot.slane %v1875, 3
          %v1887 = vsel %vm802, %v1886, %v1885
          %v1888 = vrot.slane %v1876, 2
          %v1889 = vsel %vm805, %v1888, %v1887
          %v1890 = vrot.slane %v1877, 1
          %v1891 = vsel %vm808, %v1890, %v1889
          %v1892 = vpack.c.b16 %v1891, %v1891
          %v1901 = vunpack.c.l.b16 %v1850
          %v1902 = vunpack.c.l.b16 %v1851
          %v1903 = vunpack.c.l.b16 %v1852
          %v1904 = vunpack.c.l.b16 %v1853
          %v1905 = vunpack.c.l.b16 %v1854
          %v1906 = vunpack.c.l.b16 %v1855
          %v1907 = vunpack.c.l.b16 %v1856
          %v1908 = vunpack.c.l.b16 %v1857
          %v1909 = vpack.c.b16 %v1902, %v1901
          %v1910 = vpack.c.b16 %v1904, %v1903
          %v1911 = vpack.c.b16 %v1906, %v1905
          %v1912 = vpack.c.b16 %v1908, %v1907
          %v1918 = vsel %vm971, %v1892, 0
          %1920 = vmatprep.subr.bf16.mxu0 0
          %1921 = vmatpush1.bf16.msra.mxu0 %v1909
          %1922 = vmatprep.subr.bf16.mxu0 0
          %1923 = vmatpush1.bf16.msra.mxu0 %v1910
          %1924 = vmatprep.subr.bf16.mxu0 0
          %1925 = vmatpush1.bf16.msra.mxu0 %v1911
          %1926 = vmatprep.subr.bf16.mxu0 0
          %1927 = vmatpush1.bf16.msra.mxu0 %v1912
          %1928 = vmatprep.subr.bf16.mxu0 0
          %1929 = vmatpush1.bf16.msra.mxu0 0
          %1930 = vmatprep.subr.bf16.mxu0 0
          %1931 = vmatpush1.bf16.msra.mxu0 0
          %1932 = vmatprep.subr.bf16.mxu0 0
          %1933 = vmatpush1.bf16.msra.mxu0 0
          %1934 = vmatprep.subr.bf16.mxu0 0
          %1935 = vmatpush1.bf16.msra.mxu0 0
          %1936 = vmatprep.subr.bf16.mxu0 0
          %1937 = vmatpush1.bf16.msra.mxu0 0
          %1938 = vmatprep.subr.bf16.mxu0 0
          %1939 = vmatpush1.bf16.msra.mxu0 0
          %1940 = vmatprep.subr.bf16.mxu0 0
          %1941 = vmatpush1.bf16.msra.mxu0 0
          %1942 = vmatprep.subr.bf16.mxu0 0
          %1943 = vmatpush1.bf16.msra.mxu0 0
          %1944 = vmatprep.subr.bf16.mxu0 0
          %1945 = vmatpush1.bf16.msra.mxu0 0
          %1946 = vmatprep.subr.bf16.mxu0 0
          %1947 = vmatpush1.bf16.msra.mxu0 0
          %1948 = vmatprep.subr.bf16.mxu0 0
          %1949 = vmatpush1.bf16.msra.mxu0 0
          %1950 = vmatprep.subr.bf16.mxu0 0
          %1951 = vmatpush1.bf16.msra.mxu0 0
          %1952 = vmatprep.mubr.bf16.mxu0 0
          %1953 = vmatmul.mubr.bf16.gmra.mrb[0].mxu0 %v1918
          %v1954 = vpop.f32.mrb[0].mxu0
          %v1955 = vadd.f32 %v1861, %v1954
          %v1956 = vpop.f32.mrb[0].mxu0
          %v1957 = vpop.f32.mrb[0].mxu0
          %v1958 = vpop.f32.mrb[0].mxu0
          %1959 = vdwg.mxu0
          %v1960 = vtanh.pop %v1955
          %v1961 = vpack.c.bf16 %v1960, %v1960
          %v1962 = vld [vmem:[%s527] sm:$0xf]
          %v1963 = vld [vmem:[%s527 + $0x4] sm:$0xf]
          %v1964 = vld [vmem:[%s527 + $0x8] sm:$0xf]
          %v1965 = vld [vmem:[%s527 + $0xc] sm:$0xf]
          %v1966 = vld [vmem:[%s527 + $0x10] sm:$0xf]
          %v1967 = vld [vmem:[%s527 + $0x14] sm:$0xf]
          %v1968 = vld [vmem:[%s527 + $0x18] sm:$0xf]
          %v1969 = vld [vmem:[%s527 + $0x1c] sm:$0xf]
          %v1970 = vlaneseq
          %v1971 = vshrl.u32 %v1970, 7
          %v1972 = vsub.s32 6, %v1971
          %v1973 = vrot.slane %v654, %v1972
          %v1982 = vunpack.c.l.b16 %v1962
          %v1983 = vunpack.c.l.b16 %v1963
          %v1984 = vunpack.c.l.b16 %v1964
          %v1985 = vunpack.c.l.b16 %v1965
          %v1986 = vunpack.c.l.b16 %v1966
          %v1987 = vunpack.c.l.b16 %v1967
          %v1988 = vunpack.c.l.b16 %v1968
          %v1989 = vunpack.c.l.b16 %v1969
          %v1990 = vpack.c.b16 %v1983, %v1982
          %v1991 = vpack.c.b16 %v1985, %v1984
          %v1992 = vpack.c.b16 %v1987, %v1986
          %v1993 = vpack.c.b16 %v1989, %v1988
          %v1999 = vsel %vm971, %v1961, 0
          %2001 = vmatprep.subr.bf16.mxu0 0
          %2002 = vmatpush1.bf16.msra.mxu0 %v1990
          %2003 = vmatprep.subr.bf16.mxu0 0
          %2004 = vmatpush1.bf16.msra.mxu0 %v1991
          %2005 = vmatprep.subr.bf16.mxu0 0
          %2006 = vmatpush1.bf16.msra.mxu0 %v1992
          %2007 = vmatprep.subr.bf16.mxu0 0
          %2008 = vmatpush1.bf16.msra.mxu0 %v1993
          %2009 = vmatprep.subr.bf16.mxu0 0
          %2010 = vmatpush1.bf16.msra.mxu0 0
          %2011 = vmatprep.subr.bf16.mxu0 0
          %2012 = vmatpush1.bf16.msra.mxu0 0
          %2013 = vmatprep.subr.bf16.mxu0 0
          %2014 = vmatpush1.bf16.msra.mxu0 0
          %2015 = vmatprep.subr.bf16.mxu0 0
          %2016 = vmatpush1.bf16.msra.mxu0 0
          %2017 = vmatprep.subr.bf16.mxu0 0
          %2018 = vmatpush1.bf16.msra.mxu0 0
          %2019 = vmatprep.subr.bf16.mxu0 0
          %2020 = vmatpush1.bf16.msra.mxu0 0
          %2021 = vmatprep.subr.bf16.mxu0 0
          %2022 = vmatpush1.bf16.msra.mxu0 0
          %2023 = vmatprep.subr.bf16.mxu0 0
          %2024 = vmatpush1.bf16.msra.mxu0 0
          %2025 = vmatprep.subr.bf16.mxu0 0
          %2026 = vmatpush1.bf16.msra.mxu0 0
          %2027 = vmatprep.subr.bf16.mxu0 0
          %2028 = vmatpush1.bf16.msra.mxu0 0
          %2029 = vmatprep.subr.bf16.mxu0 0
          %2030 = vmatpush1.bf16.msra.mxu0 0
          %2031 = vmatprep.subr.bf16.mxu0 0
          %2032 = vmatpush1.bf16.msra.mxu0 0
          %2033 = vmatprep.mubr.bf16.mxu0 0
          %2034 = vmatmul.mubr.bf16.gmra.mrb[0].mxu0 %v1999
          %v2035 = vpop.f32.mrb[0].mxu0
          %v2036 = vadd.f32 %v1973, %v2035
          %v2037 = vpop.f32.mrb[0].mxu0
          %v2038 = vpop.f32.mrb[0].mxu0
          %v2039 = vpop.f32.mrb[0].mxu0
          %2040 = vdwg.mxu0
          %v2041 = vtanh.pop %v2036
          %v2042 = vlaneseq
          %v2043 = vshrl.u32 %v2042, 7
          %v2044 = vsub.s32 7, %v2043
          %v2045 = vrot.slane %v654, %v2044
          %v2046 = vmul.f32 %v2041, %v2045
          %v2047 = vsel %vm971, %v2046, 0.0
          %2048 = vadd.xlane.f32.xlu0 %v2047
          %v2049 = vpop.xlane.xlu0 %2048
          %v2050 = vadd.f32 %v2049, %v2045
          %vm2051 = vcmp.gt.s32.totalorder %v653, 0
          %2053 = vrot.lane.b32.xlu0 %v2050, 64
          %v2054 = vpop.permute.xlu0 %2053
          %v2056 = vsel %vm2051, %v2054, 0.0
          %vm2057 = vcmask 7168
          %2058 = vst.msk [vmem:[%s632] sm:$0xff] %vm2057, %v2056
        $region88: #{_stages_forward_impl.1} parent=59 // pred_fallthru
          _
        %p2059 = scmp.lt.s32.totalorder %s37, 3
        %s2060 = scalar_select %p2059, %s37, 3
        %s2061 = smul.addr %s2060, 8
        %s2062 = scalar_lea.vmem %s11, %s2061
        // Predicated region
        $region89: #{_stages_forward_impl.1} parent=59 // pred_check
          %p2063 = pneg %p315
        $region90: #{_stages_forward_impl.1} parent=59 // pred_check_branch
          %2065 = sbr.rel (%p2063) target = $region92
        $region91: #{_stages_forward_impl.1} parent=59 // pred_region
          _
        $region92: #{_stages_forward_impl.1} parent=59 // pred_fallthru
          _
      $region60: #{_stages_forward_impl.1} parent=5 // pred_fallthru
        _
      %p2066 = scmp.le.s32.totalorder 2, %s32
      // Predicated region
      $region93: #{_stages_forward_impl.1} parent=5 // pred_check
        %p2067 = pneg %p2066
      $region94: #{_stages_forward_impl.1} parent=5 // pred_check_branch
        %2069 = sbr.rel (%p2067) target = $region96
      $region95: #{_stages_forward_impl.1} parent=5 // pred_region
        %s2070 = ssub.s32 %s32, 2
        // Predicated region
        $region97: #{_stages_forward_impl.1} parent=95 // pred_check
          %p2071 = pneg %p321
        $region98: #{_stages_forward_impl.1} parent=95 // pred_check_branch
          %2073 = sbr.rel (%p2071) target = $region100
        $region99: #{_stages_forward_impl.1} parent=95 // pred_region
          %p2074 = scmp.lt.s32.totalorder %s38, 3
          %s2075 = scalar_select %p2074, %s38, 3
          %s2076 = smul.addr %s2075, 8
          %s2077 = scalar_lea.vmem %s11, %s2076
        $region100: #{_stages_forward_impl.1} parent=95 // pred_fallthru
          _
      $region96: #{_stages_forward_impl.1} parent=5 // pred_fallthru
        _
    $region6: #{_stages_forward_impl.1} parent=1 // loop_footer
      %s36 = sadd.s32 1, %s32
    $region7: #{_stages_forward_impl.1} parent=1 // loop_footer_branch
      %31 = sbr.rel target = $region3
    $region8: #{_stages_forward_impl.1} parent=1 // loop_exit
      _
    %2078 = vsyncpa [#allocation5], 1
    %s2079 = scalar_lea.sflag [#allocation5], 1
    %2080 = vsyncpa %s2079, 1
    %2081 = vsyncpa [#allocation7], 1
    %s2082 = scalar_lea.sflag [#allocation7], 1
    %2083 = vsyncpa %s2082, 1
    %2084 = vsyncpa [#allocation10], 1
    %s2085 = scalar_lea.sflag [#allocation10], 1
    %2086 = vsyncpa %s2085, 1

</llo_original>
